<compile_context>
chip_gen: v7x
topology: tpu7x:2x2x1
jax: 0.10.0
libtpu: 0.0.40
codegen_flags: <defaults>
</compile_context>

<pallas_src>
import functools

import jax
import jax.numpy as jnp
from jax.experimental import pallas as pl
from jax.experimental.pallas import tpu as pltpu


# ----------------------------------------------------------------------------
# Pallas kernel: SharedMLP (1x1 conv stack, BN folded into W/b) + max-pool
# ----------------------------------------------------------------------------
def _sa_mlp_kernel(g_ref, *refs):
    """g_ref: (TILE_S, NS, Cin) block of grouped neighborhoods.
    refs = (w1, b1, w2, b2, ..., out_ref);  wj already includes the BN scale,
    bj is the folded BN bias.  out_ref: (Cout, TILE_S) channels-first block."""
    out_ref = refs[-1]
    params = refs[:-1]
    n_layers = len(params) // 2

    ts, ns, cin = g_ref.shape
    # Center-major rows (row = s*NS + k) so the later (TILE_S, NS, Cout) view
    # used for the max-pool stays aligned with sublane groups.
    h = g_ref[...].reshape(ts * ns, cin)                  # (TILE_S*NS, Cin)
    for j in range(n_layers):
        w = params[2 * j][...]                            # (Cj, Cj+1) compute dtype
        b = params[2 * j + 1][...]                        # (1, Cj+1)  f32 bias
        h = jnp.dot(h.astype(w.dtype), w,
                    preferred_element_type=jnp.float32)   # MXU, f32 accumulate
        h = jnp.maximum(h + b, 0.0)                       # folded BN bias + ReLU
    cout = h.shape[-1]
    pooled = jnp.max(h.reshape(ts, ns, cout), axis=1)     # (TILE_S, Cout)
    # Channels-first, lane-dense store (last dim = TILE_S).
    out_ref[...] = pooled.T.astype(out_ref.dtype)         # (Cout, TILE_S)


def _const_index_map(ndim):
    zeros = (0,) * ndim
    return lambda *args: zeros


def _choose_tile_s(S, NS, cin_p, widths, compute_bytes, budget_bytes=12 << 20):
    """Pick TILE_S: as many centers per grid step as fit a VMEM budget, with the
    last output dim either == S (full extent) or a multiple of 128 (lane-dense)."""
    max_c = max(widths + [cin_p])
    cout = widths[-1]
    per_center = (NS * (cin_p * compute_bytes * 2        # double-buffered input
                        + max_c * 4 * 2)                  # live f32 activations
                  + cout * 4 * 2)                         # double-buffered output
    cap = max(1, budget_bytes // per_center)
    if S <= cap:
        return S
    t = (cap // 128) * 128
    while t >= 128:
        if S % t == 0:
            return t
        t -= 128
    return S                                              # fallback: full extent


def sa_mlp_maxpool(grouped, layer_params):
    """grouped: (B, S, NS, Cin_p) channels-last (compute dtype).
    Returns (B, Cout, S) float32, channels-first."""
    B, S, NS, Cin_p = grouped.shape
    widths = [p[0].shape[1] for p in layer_params]
    Cout = widths[-1]
    tile_s = _choose_tile_s(S, NS, Cin_p, widths, grouped.dtype.itemsize)
    flat_params = [a for p in layer_params for a in p]

    in_specs = [pl.BlockSpec((None, tile_s, NS, Cin_p), lambda b, s: (b, s, 0, 0))]
    for arr in flat_params:
        in_specs.append(pl.BlockSpec(arr.shape, _const_index_map(arr.ndim)))

    return pl.pallas_call(
        _sa_mlp_kernel,
        out_shape=jax.ShapeDtypeStruct((B, Cout, S), jnp.float32),
        grid=(B, S // tile_s),
        in_specs=in_specs,
        out_specs=pl.BlockSpec((None, Cout, tile_s), lambda b, s: (b, 0, s)),
        compiler_params=pltpu.CompilerParams(
            dimension_semantics=("parallel", "parallel"),
            vmem_limit_bytes=32 * 1024 * 1024),
    )(grouped, *flat_params)


# ----------------------------------------------------------------------------
# Plain-JAX glue: FPS, ball query, grouping (data-dependent gathers)
# ----------------------------------------------------------------------------
def furthest_point_sample(xyz, npoint):
    """xyz: (B, N, 3) f32 -> (B, npoint) int32.  Matches pointnet2 CUDA FPS
    (starts from index 0, running min-distance, argmax selection)."""
    B, N, _ = xyz.shape
    batch = jnp.arange(B)

    def body(i, carry):
        dist, farthest, inds = carry
        inds = inds.at[:, i].set(farthest)
        centroid = xyz[batch, farthest]                   # (B, 3)
        d = jnp.sum((xyz - centroid[:, None, :]) ** 2, axis=-1)
        dist = jnp.minimum(dist, d)
        farthest = jnp.argmax(dist, axis=-1).astype(jnp.int32)
        return dist, farthest, inds

    dist0 = jnp.full((B, N), 1e10, jnp.float32)
    far0 = jnp.zeros((B,), jnp.int32)
    inds0 = jnp.zeros((B, npoint), jnp.int32)
    _, _, inds = jax.lax.fori_loop(0, npoint, body, (dist0, far0, inds0))
    return inds


def ball_query(radius, nsample, xyz, new_xyz):
    """xyz (B,N,3), new_xyz (B,S,3) -> idx (B,S,nsample) int32.
    Reproduces CUDA ball_query: first `nsample` indices (original order) with
    d^2 < r^2, padded with the first found index."""
    # TODO(synk): O(B*S*N log N) argsort; replace with a Pallas tiled search for
    # production-scale point clouds.
    B, N, _ = xyz.shape
    d2 = jnp.sum((new_xyz[:, :, None, :] - xyz[:, None, :, :]) ** 2, axis=-1)
    mask = d2 < radius * radius
    key = jnp.where(mask, jnp.arange(N)[None, None, :], N)
    order = jnp.argsort(key, axis=-1).astype(jnp.int32)   # stable sort
    idx = order[..., :nsample]
    cnt = jnp.sum(mask, axis=-1, keepdims=True)
    pos = jnp.arange(nsample)[None, None, :]
    idx = jnp.where(pos < cnt, idx, idx[..., :1])
    return idx


def query_and_group(xyz, new_xyz, features, radius, nsample, cin_pad, dtype):
    """QueryAndGroup(use_xyz=True, normalize_xyz=True).
    features: (B, C, N) channels-first or None.
    Returns channels-last grouped tensor (B, S, nsample, cin_pad) in `dtype`
    (channel dim zero-padded to match the padded first-layer weight rows; the
    padding is fused into the same concatenate that materializes `grouped`)."""
    B, S = new_xyz.shape[0], new_xyz.shape[1]
    idx = ball_query(radius, nsample, xyz, new_xyz)       # (B, S, ns)
    bidx = jnp.arange(B)[:, None, None]
    grouped_xyz = xyz[bidx, idx]                          # (B, S, ns, 3)
    grouped_xyz = (grouped_xyz - new_xyz[:, :, None, :]) / radius
    parts = [grouped_xyz.astype(dtype)]
    if features is not None:
        feats_nl = jnp.transpose(features, (0, 2, 1))     # (B, N, C)
        parts.append(feats_nl[bidx, idx].astype(dtype))   # (B, S, ns, C)
    c = sum(p.shape[-1] for p in parts)
    if c < cin_pad:
        parts.append(jnp.zeros((B, S, nsample, cin_pad - c), dtype))
    return jnp.concatenate(parts, axis=-1)


def pointnet_sa_module(xyz, features, layer_params, npoint, radius, nsample):
    """PointnetSAModuleVotes(use_xyz=True, normalize_xyz=True, pooling='max')."""
    B = xyz.shape[0]
    inds = furthest_point_sample(xyz, npoint)             # (B, npoint) int32
    new_xyz = xyz[jnp.arange(B)[:, None], inds]           # (B, npoint, 3)
    cin_pad = layer_params[0][0].shape[0]                 # padded first-layer rows
    compute_dtype = layer_params[0][0].dtype
    grouped = query_and_group(xyz, new_xyz, features, radius, nsample,
                              cin_pad, compute_dtype)
    new_features = sa_mlp_maxpool(grouped, layer_params)  # (B, Cout, npoint)
    return new_xyz, new_features, inds


# ----------------------------------------------------------------------------
# keypoint_encoder forward
# ----------------------------------------------------------------------------
def keypoint_encoder_forward(inputs, all_params, cfg):
    """inputs: (B, 3 + in_channels, N) float32, same layout as the PyTorch module."""
    xyz = jnp.transpose(inputs[:, 0:3, :], (0, 2, 1))     # (B, N, 3)
    features = inputs[:, 3:, :] if cfg["in_channels"] > 0 else None

    coor_dict = {}
    old_ind = None
    for i in range(len(cfg["npoint"])):
        xyz, features, ind = pointnet_sa_module(
            xyz, features, all_params[i],
            cfg["npoint"][i], cfg["radius"][i], cfg["nsample"][i])
        if i == 0:
            old_ind = ind
        else:
            old_ind = jnp.take_along_axis(old_ind, ind, axis=1)
        # (PyTorch hard-codes keys 'xyz_2048' etc.; here keyed by actual npoint)
        coor_dict[f"xyz_{cfg['npoint'][i]}"] = xyz
        coor_dict[f"ind_{cfg['npoint'][i]}"] = old_ind
    return xyz, features, coor_dict


# ----------------------------------------------------------------------------
# Deterministic parameter init (SharedMLP convs without bias, BN folded into W/b)
# ----------------------------------------------------------------------------
def init_params(key, cfg, compute_dtype=jnp.bfloat16):
    # TODO(synk): BatchNorm is reproduced in inference mode (folded running
    # stats); training-mode batch statistics are not reproduced.
    eps = 1e-5
    mlps = [list(m) for m in cfg["mlp"]]
    mlps[0][0] = cfg["in_channels"]
    mlps[-1][-1] = cfg["output_channels"]

    all_params = []
    for spec in mlps:
        spec = list(spec)
        spec[0] += 3                                      # use_xyz=True
        layer_params = []
        for j in range(len(spec) - 1):
            cin, cout = spec[j], spec[j + 1]
            key, kw, kg, kb = jax.random.split(key, 4)
            w = 0.1 * jax.random.normal(kw, (cin, cout), jnp.float32)
            gamma = 1.0 + 0.05 * jax.random.normal(kg, (cout,), jnp.float32)
            beta = 0.05 * jax.random.normal(kb, (cout,), jnp.float32)
            running_mean = jnp.zeros((cout,), jnp.float32)
            running_var = jnp.ones((cout,), jnp.float32)
            scale = gamma / jnp.sqrt(running_var + eps)
            bias = beta - running_mean * scale
            # Fold BN scale into the weight columns: h@W' + b == s*(h@W) + b.
            w_folded = w * scale[None, :]
            if j == 0:
                # Zero-pad first-layer rows so the grouped channel dim (3+C)
                # can be padded to a multiple of 8 at zero extra cost.
                cin_p = -(-cin // 8) * 8
                if cin_p != cin:
                    w_folded = jnp.concatenate(
                        [w_folded, jnp.zeros((cin_p - cin, cout), jnp.float32)],
                        axis=0)
            layer_params.append((w_folded.astype(compute_dtype),
                                 bias.reshape(1, cout).astype(jnp.float32)))
        all_params.append(layer_params)
    return all_params


if __name__ == "__main__":
    key = jax.random.PRNGKey(0)

    # Small shapes consistent with the module (scaled-down PointNet++ stack).
    cfg = dict(
        in_channels=3,
        output_channels=32,
        npoint=[16, 8, 4],
        radius=[0.2, 0.4, 0.8],
        nsample=[8, 8, 4],
        mlp=[[3, 16, 16, 32], [32, 32, 32, 32], [32, 32, 32, 32]],
    )
    B, N = 2, 64

    params = init_params(key, cfg)
    inputs = jax.random.uniform(
        jax.random.fold_in(key, 123), (B, 3 + cfg["in_channels"], N), jnp.float32)

    fwd = jax.jit(functools.partial(keypoint_encoder_forward,
                                    all_params=params, cfg=cfg))
    xyz, features, coor_dict = fwd(inputs)
    jax.block_until_ready((xyz, features, coor_dict))

    assert xyz.shape == (B, cfg["npoint"][-1], 3)
    assert features.shape == (B, cfg["output_channels"], cfg["npoint"][-1])
    assert coor_dict["ind_4"].shape == (B, 4)
    print("KERNEL_OK")
</pallas_src>

<mosaic_0001>
module attributes {stable_mosaic.version = 11 : i64} {
  func.func @_sa_mlp_kernel(%arg0: i32, %arg1: i32, %arg2: memref<1x16x8x8xbf16, #tpu.memory_space<vmem>>, %arg3: memref<8x16xbf16, #tpu.memory_space<vmem>>, %arg4: memref<1x16xf32, #tpu.memory_space<vmem>>, %arg5: memref<16x16xbf16, #tpu.memory_space<vmem>>, %arg6: memref<1x16xf32, #tpu.memory_space<vmem>>, %arg7: memref<16x32xbf16, #tpu.memory_space<vmem>>, %arg8: memref<1x32xf32, #tpu.memory_space<vmem>>, %arg9: memref<1x32x16xf32, #tpu.memory_space<vmem>>) attributes {dimension_semantics = [#tpu.dimension_semantics<parallel>, #tpu.dimension_semantics<parallel>], iteration_bounds = array<i64: 2, 1>, scalar_prefetch = 0 : i64, scratch_operands = 0 : i64, tpu.core_type = #tpu.core_type<tc>, window_params = [{transform_indices = @transform_0, window_bounds = array<i64: 1, 16, 8, 8>}, {pipeline_mode = #tpu.pipeline_mode<synchronous>, transform_indices = @transform_1, window_bounds = array<i64: 8, 16>}, {pipeline_mode = #tpu.pipeline_mode<synchronous>, transform_indices = @transform_2, window_bounds = array<i64: 1, 16>}, {pipeline_mode = #tpu.pipeline_mode<synchronous>, transform_indices = @transform_3, window_bounds = array<i64: 16, 16>}, {pipeline_mode = #tpu.pipeline_mode<synchronous>, transform_indices = @transform_4, window_bounds = array<i64: 1, 16>}, {pipeline_mode = #tpu.pipeline_mode<synchronous>, transform_indices = @transform_5, window_bounds = array<i64: 16, 32>}, {pipeline_mode = #tpu.pipeline_mode<synchronous>, transform_indices = @transform_6, window_bounds = array<i64: 1, 32>}, {transform_indices = @transform_7, window_bounds = array<i64: 1, 32, 16>}]} {
    %c0 = arith.constant 0 : index
    %c0_0 = arith.constant 0 : index
    %c0_1 = arith.constant 0 : index
    %c0_2 = arith.constant 0 : index
    %0 = vector.load %arg2[%c0, %c0_0, %c0_1, %c0_2] : memref<1x16x8x8xbf16, #tpu.memory_space<vmem>>, vector<1x16x8x8xbf16>
    %1 = vector.shape_cast %0 : vector<1x16x8x8xbf16> to vector<16x8x8xbf16>
    %2 = vector.shape_cast %1 : vector<16x8x8xbf16> to vector<128x8xbf16>
    %c0_3 = arith.constant 0 : index
    %c0_4 = arith.constant 0 : index
    %3 = vector.load %arg3[%c0_3, %c0_4] : memref<8x16xbf16, #tpu.memory_space<vmem>>, vector<8x16xbf16>
    %c0_5 = arith.constant 0 : index
    %c0_6 = arith.constant 0 : index
    %4 = vector.load %arg4[%c0_5, %c0_6] : memref<1x16xf32, #tpu.memory_space<vmem>>, vector<1x16xf32>
    %cst = arith.constant dense<0.000000e+00> : vector<128x16xf32>
    %5 = tpu.matmul %2, %3, %cst {dimension_numbers = #tpu.dot_dimension_numbers<[1], [0], [0], [1], [0, 0, 1, 1], [], []>} : vector<128x8xbf16>, vector<8x16xbf16>, vector<128x16xf32> -> vector<128x16xf32>
    %6 = vector.broadcast %4 : vector<1x16xf32> to vector<128x16xf32>
    %7 = arith.addf %5, %6 : vector<128x16xf32>
    %cst_7 = arith.constant 0.000000e+00 : f32
    %8 = vector.broadcast %cst_7 : f32 to vector<128x16xf32>
    %9 = arith.maximumf %7, %8 : vector<128x16xf32>
    %c0_8 = arith.constant 0 : index
    %c0_9 = arith.constant 0 : index
    %10 = vector.load %arg5[%c0_8, %c0_9] : memref<16x16xbf16, #tpu.memory_space<vmem>>, vector<16x16xbf16>
    %c0_10 = arith.constant 0 : index
    %c0_11 = arith.constant 0 : index
    %11 = vector.load %arg6[%c0_10, %c0_11] : memref<1x16xf32, #tpu.memory_space<vmem>>, vector<1x16xf32>
    %12 = arith.truncf %9 : vector<128x16xf32> to vector<128x16xbf16>
    %cst_12 = arith.constant dense<0.000000e+00> : vector<128x16xf32>
    %13 = tpu.matmul %12, %10, %cst_12 {dimension_numbers = #tpu.dot_dimension_numbers<[1], [0], [0], [1], [0, 0, 1, 1], [], []>} : vector<128x16xbf16>, vector<16x16xbf16>, vector<128x16xf32> -> vector<128x16xf32>
    %14 = vector.broadcast %11 : vector<1x16xf32> to vector<128x16xf32>
    %15 = arith.addf %13, %14 : vector<128x16xf32>
    %cst_13 = arith.constant 0.000000e+00 : f32
    %16 = vector.broadcast %cst_13 : f32 to vector<128x16xf32>
    %17 = arith.maximumf %15, %16 : vector<128x16xf32>
    %c0_14 = arith.constant 0 : index
    %c0_15 = arith.constant 0 : index
    %18 = vector.load %arg7[%c0_14, %c0_15] : memref<16x32xbf16, #tpu.memory_space<vmem>>, vector<16x32xbf16>
    %c0_16 = arith.constant 0 : index
    %c0_17 = arith.constant 0 : index
    %19 = vector.load %arg8[%c0_16, %c0_17] : memref<1x32xf32, #tpu.memory_space<vmem>>, vector<1x32xf32>
    %20 = arith.truncf %17 : vector<128x16xf32> to vector<128x16xbf16>
    %cst_18 = arith.constant dense<0.000000e+00> : vector<128x32xf32>
    %21 = tpu.matmul %20, %18, %cst_18 {dimension_numbers = #tpu.dot_dimension_numbers<[1], [0], [0], [1], [0, 0, 1, 1], [], []>} : vector<128x16xbf16>, vector<16x32xbf16>, vector<128x32xf32> -> vector<128x32xf32>
    %22 = vector.broadcast %19 : vector<1x32xf32> to vector<128x32xf32>
    %23 = arith.addf %21, %22 : vector<128x32xf32>
    %cst_19 = arith.constant 0.000000e+00 : f32
    %24 = vector.broadcast %cst_19 : f32 to vector<128x32xf32>
    %25 = arith.maximumf %23, %24 : vector<128x32xf32>
    %26 = vector.shape_cast %25 : vector<128x32xf32> to vector<16x8x32xf32>
    %cst_20 = arith.constant dense<0xFF800000> : vector<16x32xf32>
    %27 = vector.multi_reduction <maximumf>, %26, %cst_20 [1] : vector<16x8x32xf32> to vector<16x32xf32>
    %28 = tpu.transpose %27, [1, 0] : vector<16x32xf32> -> vector<32x16xf32>
    %c0_21 = arith.constant 0 : index
    %c0_22 = arith.constant 0 : index
    %c0_23 = arith.constant 0 : index
    %29 = vector.load %arg9[%c0_21, %c0_22, %c0_23] : memref<1x32x16xf32, #tpu.memory_space<vmem>>, vector<1x32x16xf32>
    %30 = vector.shape_cast %29 : vector<1x32x16xf32> to vector<32x16xf32>
    %31 = vector.shape_cast %28 : vector<32x16xf32> to vector<1x32x16xf32>
    tpu.vector_store %arg9[%c0_21, %c0_22, %c0_23], %31 {strides = array<i32>} : memref<1x32x16xf32, #tpu.memory_space<vmem>>, vector<1x32x16xf32>,
    return
  }
  func.func @transform_0(%arg0: i32, %arg1: i32) -> (i32, i32, i32, i32) {
    %c0_i32 = arith.constant 0 : i32
    %c0_i32_0 = arith.constant 0 : i32
    %c0_i32_1 = arith.constant 0 : i32
    return %arg0, %arg1, %c0_i32, %c0_i32_0 : i32, i32, i32, i32
  }
  func.func @transform_1(%arg0: i32, %arg1: i32) -> (i32, i32) {
    %c0_i32 = arith.constant 0 : i32
    %c0_i32_0 = arith.constant 0 : i32
    %c0_i32_1 = arith.constant 0 : i32
    return %c0_i32, %c0_i32_0 : i32, i32
  }
  func.func @transform_2(%arg0: i32, %arg1: i32) -> (i32, i32) {
    %c0_i32 = arith.constant 0 : i32
    %c0_i32_0 = arith.constant 0 : i32
    %c0_i32_1 = arith.constant 0 : i32
    return %c0_i32, %c0_i32_0 : i32, i32
  }
  func.func @transform_3(%arg0: i32, %arg1: i32) -> (i32, i32) {
    %c0_i32 = arith.constant 0 : i32
    %c0_i32_0 = arith.constant 0 : i32
    %c0_i32_1 = arith.constant 0 : i32
    return %c0_i32, %c0_i32_0 : i32, i32
  }
  func.func @transform_4(%arg0: i32, %arg1: i32) -> (i32, i32) {
    %c0_i32 = arith.constant 0 : i32
    %c0_i32_0 = arith.constant 0 : i32
    %c0_i32_1 = arith.constant 0 : i32
    return %c0_i32, %c0_i32_0 : i32, i32
  }
  func.func @transform_5(%arg0: i32, %arg1: i32) -> (i32, i32) {
    %c0_i32 = arith.constant 0 : i32
    %c0_i32_0 = arith.constant 0 : i32
    %c0_i32_1 = arith.constant 0 : i32
    return %c0_i32, %c0_i32_0 : i32, i32
  }
  func.func @transform_6(%arg0: i32, %arg1: i32) -> (i32, i32) {
    %c0_i32 = arith.constant 0 : i32
    %c0_i32_0 = arith.constant 0 : i32
    %c0_i32_1 = arith.constant 0 : i32
    return %c0_i32, %c0_i32_0 : i32, i32
  }
  func.func @transform_7(%arg0: i32, %arg1: i32) -> (i32, i32, i32) {
    %c0_i32 = arith.constant 0 : i32
    %c0_i32_0 = arith.constant 0 : i32
    return %arg0, %c0_i32, %arg1 : i32, i32, i32
  }
}

module attributes {stable_mosaic.version = 11 : i64} {
  func.func @_sa_mlp_kernel(%arg0: i32, %arg1: i32, %arg2: memref<1x8x8x40xbf16, #tpu.memory_space<vmem>>, %arg3: memref<40x32xbf16, #tpu.memory_space<vmem>>, %arg4: memref<1x32xf32, #tpu.memory_space<vmem>>, %arg5: memref<32x32xbf16, #tpu.memory_space<vmem>>, %arg6: memref<1x32xf32, #tpu.memory_space<vmem>>, %arg7: memref<32x32xbf16, #tpu.memory_space<vmem>>, %arg8: memref<1x32xf32, #tpu.memory_space<vmem>>, %arg9: memref<1x32x8xf32, #tpu.memory_space<vmem>>) attributes {dimension_semantics = [#tpu.dimension_semantics<parallel>, #tpu.dimension_semantics<parallel>], iteration_bounds = array<i64: 2, 1>, scalar_prefetch = 0 : i64, scratch_operands = 0 : i64, tpu.core_type = #tpu.core_type<tc>, window_params = [{transform_indices = @transform_0, window_bounds = array<i64: 1, 8, 8, 40>}, {pipeline_mode = #tpu.pipeline_mode<synchronous>, transform_indices = @transform_1, window_bounds = array<i64: 40, 32>}, {pipeline_mode = #tpu.pipeline_mode<synchronous>, transform_indices = @transform_2, window_bounds = array<i64: 1, 32>}, {pipeline_mode = #tpu.pipeline_mode<synchronous>, transform_indices = @transform_3, window_bounds = array<i64: 32, 32>}, {pipeline_mode = #tpu.pipeline_mode<synchronous>, transform_indices = @transform_4, window_bounds = array<i64: 1, 32>}, {pipeline_mode = #tpu.pipeline_mode<synchronous>, transform_indices = @transform_5, window_bounds = array<i64: 32, 32>}, {pipeline_mode = #tpu.pipeline_mode<synchronous>, transform_indices = @transform_6, window_bounds = array<i64: 1, 32>}, {transform_indices = @transform_7, window_bounds = array<i64: 1, 32, 8>}]} {
    %c0 = arith.constant 0 : index
    %c0_0 = arith.constant 0 : index
    %c0_1 = arith.constant 0 : index
    %c0_2 = arith.constant 0 : index
    %0 = vector.load %arg2[%c0, %c0_0, %c0_1, %c0_2] : memref<1x8x8x40xbf16, #tpu.memory_space<vmem>>, vector<1x8x8x40xbf16>
    %1 = vector.shape_cast %0 : vector<1x8x8x40xbf16> to vector<8x8x40xbf16>
    %2 = vector.shape_cast %1 : vector<8x8x40xbf16> to vector<64x40xbf16>
    %c0_3 = arith.constant 0 : index
    %c0_4 = arith.constant 0 : index
    %3 = vector.load %arg3[%c0_3, %c0_4] : memref<40x32xbf16, #tpu.memory_space<vmem>>, vector<40x32xbf16>
    %c0_5 = arith.constant 0 : index
    %c0_6 = arith.constant 0 : index
    %4 = vector.load %arg4[%c0_5, %c0_6] : memref<1x32xf32, #tpu.memory_space<vmem>>, vector<1x32xf32>
    %cst = arith.constant dense<0.000000e+00> : vector<64x32xf32>
    %5 = tpu.matmul %2, %3, %cst {dimension_numbers = #tpu.dot_dimension_numbers<[1], [0], [0], [1], [0, 0, 1, 1], [], []>} : vector<64x40xbf16>, vector<40x32xbf16>, vector<64x32xf32> -> vector<64x32xf32>
    %6 = vector.broadcast %4 : vector<1x32xf32> to vector<64x32xf32>
    %7 = arith.addf %5, %6 : vector<64x32xf32>
    %cst_7 = arith.constant 0.000000e+00 : f32
    %8 = vector.broadcast %cst_7 : f32 to vector<64x32xf32>
    %9 = arith.maximumf %7, %8 : vector<64x32xf32>
    %c0_8 = arith.constant 0 : index
    %c0_9 = arith.constant 0 : index
    %10 = vector.load %arg5[%c0_8, %c0_9] : memref<32x32xbf16, #tpu.memory_space<vmem>>, vector<32x32xbf16>
    %c0_10 = arith.constant 0 : index
    %c0_11 = arith.constant 0 : index
    %11 = vector.load %arg6[%c0_10, %c0_11] : memref<1x32xf32, #tpu.memory_space<vmem>>, vector<1x32xf32>
    %12 = arith.truncf %9 : vector<64x32xf32> to vector<64x32xbf16>
    %cst_12 = arith.constant dense<0.000000e+00> : vector<64x32xf32>
    %13 = tpu.matmul %12, %10, %cst_12 {dimension_numbers = #tpu.dot_dimension_numbers<[1], [0], [0], [1], [0, 0, 1, 1], [], []>} : vector<64x32xbf16>, vector<32x32xbf16>, vector<64x32xf32> -> vector<64x32xf32>
    %14 = vector.broadcast %11 : vector<1x32xf32> to vector<64x32xf32>
    %15 = arith.addf %13, %14 : vector<64x32xf32>
    %cst_13 = arith.constant 0.000000e+00 : f32
    %16 = vector.broadcast %cst_13 : f32 to vector<64x32xf32>
    %17 = arith.maximumf %15, %16 : vector<64x32xf32>
    %c0_14 = arith.constant 0 : index
    %c0_15 = arith.constant 0 : index
    %18 = vector.load %arg7[%c0_14, %c0_15] : memref<32x32xbf16, #tpu.memory_space<vmem>>, vector<32x32xbf16>
    %c0_16 = arith.constant 0 : index
    %c0_17 = arith.constant 0 : index
    %19 = vector.load %arg8[%c0_16, %c0_17] : memref<1x32xf32, #tpu.memory_space<vmem>>, vector<1x32xf32>
    %20 = arith.truncf %17 : vector<64x32xf32> to vector<64x32xbf16>
    %cst_18 = arith.constant dense<0.000000e+00> : vector<64x32xf32>
    %21 = tpu.matmul %20, %18, %cst_18 {dimension_numbers = #tpu.dot_dimension_numbers<[1], [0], [0], [1], [0, 0, 1, 1], [], []>} : vector<64x32xbf16>, vector<32x32xbf16>, vector<64x32xf32> -> vector<64x32xf32>
    %22 = vector.broadcast %19 : vector<1x32xf32> to vector<64x32xf32>
    %23 = arith.addf %21, %22 : vector<64x32xf32>
    %cst_19 = arith.constant 0.000000e+00 : f32
    %24 = vector.broadcast %cst_19 : f32 to vector<64x32xf32>
    %25 = arith.maximumf %23, %24 : vector<64x32xf32>
    %26 = vector.shape_cast %25 : vector<64x32xf32> to vector<8x8x32xf32>
    %cst_20 = arith.constant dense<0xFF800000> : vector<8x32xf32>
    %27 = vector.multi_reduction <maximumf>, %26, %cst_20 [1] : vector<8x8x32xf32> to vector<8x32xf32>
    %28 = tpu.transpose %27, [1, 0] : vector<8x32xf32> -> vector<32x8xf32>
    %c0_21 = arith.constant 0 : index
    %c0_22 = arith.constant 0 : index
    %c0_23 = arith.constant 0 : index
    %29 = vector.load %arg9[%c0_21, %c0_22, %c0_23] : memref<1x32x8xf32, #tpu.memory_space<vmem>>, vector<1x32x8xf32>
    %30 = vector.shape_cast %29 : vector<1x32x8xf32> to vector<32x8xf32>
    %31 = vector.shape_cast %28 : vector<32x8xf32> to vector<1x32x8xf32>
    tpu.vector_store %arg9[%c0_21, %c0_22, %c0_23], %31 {strides = array<i32>} : memref<1x32x8xf32, #tpu.memory_space<vmem>>, vector<1x32x8xf32>,
    return
  }
  func.func @transform_0(%arg0: i32, %arg1: i32) -> (i32, i32, i32, i32) {
    %c0_i32 = arith.constant 0 : i32
    %c0_i32_0 = arith.constant 0 : i32
    %c0_i32_1 = arith.constant 0 : i32
    return %arg0, %arg1, %c0_i32, %c0_i32_0 : i32, i32, i32, i32
  }
  func.func @transform_1(%arg0: i32, %arg1: i32) -> (i32, i32) {
    %c0_i32 = arith.constant 0 : i32
    %c0_i32_0 = arith.constant 0 : i32
    %c0_i32_1 = arith.constant 0 : i32
    return %c0_i32, %c0_i32_0 : i32, i32
  }
  func.func @transform_2(%arg0: i32, %arg1: i32) -> (i32, i32) {
    %c0_i32 = arith.constant 0 : i32
    %c0_i32_0 = arith.constant 0 : i32
    %c0_i32_1 = arith.constant 0 : i32
    return %c0_i32, %c0_i32_0 : i32, i32
  }
  func.func @transform_3(%arg0: i32, %arg1: i32) -> (i32, i32) {
    %c0_i32 = arith.constant 0 : i32
    %c0_i32_0 = arith.constant 0 : i32
    %c0_i32_1 = arith.constant 0 : i32
    return %c0_i32, %c0_i32_0 : i32, i32
  }
  func.func @transform_4(%arg0: i32, %arg1: i32) -> (i32, i32) {
    %c0_i32 = arith.constant 0 : i32
    %c0_i32_0 = arith.constant 0 : i32
    %c0_i32_1 = arith.constant 0 : i32
    return %c0_i32, %c0_i32_0 : i32, i32
  }
  func.func @transform_5(%arg0: i32, %arg1: i32) -> (i32, i32) {
    %c0_i32 = arith.constant 0 : i32
    %c0_i32_0 = arith.constant 0 : i32
    %c0_i32_1 = arith.constant 0 : i32
    return %c0_i32, %c0_i32_0 : i32, i32
  }
  func.func @transform_6(%arg0: i32, %arg1: i32) -> (i32, i32) {
    %c0_i32 = arith.constant 0 : i32
    %c0_i32_0 = arith.constant 0 : i32
    %c0_i32_1 = arith.constant 0 : i32
    return %c0_i32, %c0_i32_0 : i32, i32
  }
  func.func @transform_7(%arg0: i32, %arg1: i32) -> (i32, i32, i32) {
    %c0_i32 = arith.constant 0 : i32
    %c0_i32_0 = arith.constant 0 : i32
    return %arg0, %c0_i32, %arg1 : i32, i32, i32
  }
}

module attributes {stable_mosaic.version = 11 : i64} {
  func.func @_sa_mlp_kernel(%arg0: i32, %arg1: i32, %arg2: memref<1x4x4x40xbf16, #tpu.memory_space<vmem>>, %arg3: memref<40x32xbf16, #tpu.memory_space<vmem>>, %arg4: memref<1x32xf32, #tpu.memory_space<vmem>>, %arg5: memref<32x32xbf16, #tpu.memory_space<vmem>>, %arg6: memref<1x32xf32, #tpu.memory_space<vmem>>, %arg7: memref<32x32xbf16, #tpu.memory_space<vmem>>, %arg8: memref<1x32xf32, #tpu.memory_space<vmem>>, %arg9: memref<1x32x4xf32, #tpu.memory_space<vmem>>) attributes {dimension_semantics = [#tpu.dimension_semantics<parallel>, #tpu.dimension_semantics<parallel>], iteration_bounds = array<i64: 2, 1>, scalar_prefetch = 0 : i64, scratch_operands = 0 : i64, tpu.core_type = #tpu.core_type<tc>, window_params = [{transform_indices = @transform_0, window_bounds = array<i64: 1, 4, 4, 40>}, {pipeline_mode = #tpu.pipeline_mode<synchronous>, transform_indices = @transform_1, window_bounds = array<i64: 40, 32>}, {pipeline_mode = #tpu.pipeline_mode<synchronous>, transform_indices = @transform_2, window_bounds = array<i64: 1, 32>}, {pipeline_mode = #tpu.pipeline_mode<synchronous>, transform_indices = @transform_3, window_bounds = array<i64: 32, 32>}, {pipeline_mode = #tpu.pipeline_mode<synchronous>, transform_indices = @transform_4, window_bounds = array<i64: 1, 32>}, {pipeline_mode = #tpu.pipeline_mode<synchronous>, transform_indices = @transform_5, window_bounds = array<i64: 32, 32>}, {pipeline_mode = #tpu.pipeline_mode<synchronous>, transform_indices = @transform_6, window_bounds = array<i64: 1, 32>}, {transform_indices = @transform_7, window_bounds = array<i64: 1, 32, 4>}]} {
    %c0 = arith.constant 0 : index
    %c0_0 = arith.constant 0 : index
    %c0_1 = arith.constant 0 : index
    %c0_2 = arith.constant 0 : index
    %0 = vector.load %arg2[%c0, %c0_0, %c0_1, %c0_2] : memref<1x4x4x40xbf16, #tpu.memory_space<vmem>>, vector<1x4x4x40xbf16>
    %1 = vector.shape_cast %0 : vector<1x4x4x40xbf16> to vector<4x4x40xbf16>
    %2 = vector.shape_cast %1 : vector<4x4x40xbf16> to vector<16x40xbf16>
    %c0_3 = arith.constant 0 : index
    %c0_4 = arith.constant 0 : index
    %3 = vector.load %arg3[%c0_3, %c0_4] : memref<40x32xbf16, #tpu.memory_space<vmem>>, vector<40x32xbf16>
    %c0_5 = arith.constant 0 : index
    %c0_6 = arith.constant 0 : index
    %4 = vector.load %arg4[%c0_5, %c0_6] : memref<1x32xf32, #tpu.memory_space<vmem>>, vector<1x32xf32>
    %cst = arith.constant dense<0.000000e+00> : vector<16x32xf32>
    %5 = tpu.matmul %2, %3, %cst {dimension_numbers = #tpu.dot_dimension_numbers<[1], [0], [0], [1], [0, 0, 1, 1], [], []>} : vector<16x40xbf16>, vector<40x32xbf16>, vector<16x32xf32> -> vector<16x32xf32>
    %6 = vector.broadcast %4 : vector<1x32xf32> to vector<16x32xf32>
    %7 = arith.addf %5, %6 : vector<16x32xf32>
    %cst_7 = arith.constant 0.000000e+00 : f32
    %8 = vector.broadcast %cst_7 : f32 to vector<16x32xf32>
    %9 = arith.maximumf %7, %8 : vector<16x32xf32>
    %c0_8 = arith.constant 0 : index
    %c0_9 = arith.constant 0 : index
    %10 = vector.load %arg5[%c0_8, %c0_9] : memref<32x32xbf16, #tpu.memory_space<vmem>>, vector<32x32xbf16>
    %c0_10 = arith.constant 0 : index
    %c0_11 = arith.constant 0 : index
    %11 = vector.load %arg6[%c0_10, %c0_11] : memref<1x32xf32, #tpu.memory_space<vmem>>, vector<1x32xf32>
    %12 = arith.truncf %9 : vector<16x32xf32> to vector<16x32xbf16>
    %cst_12 = arith.constant dense<0.000000e+00> : vector<16x32xf32>
    %13 = tpu.matmul %12, %10, %cst_12 {dimension_numbers = #tpu.dot_dimension_numbers<[1], [0], [0], [1], [0, 0, 1, 1], [], []>} : vector<16x32xbf16>, vector<32x32xbf16>, vector<16x32xf32> -> vector<16x32xf32>
    %14 = vector.broadcast %11 : vector<1x32xf32> to vector<16x32xf32>
    %15 = arith.addf %13, %14 : vector<16x32xf32>
    %cst_13 = arith.constant 0.000000e+00 : f32
    %16 = vector.broadcast %cst_13 : f32 to vector<16x32xf32>
    %17 = arith.maximumf %15, %16 : vector<16x32xf32>
    %c0_14 = arith.constant 0 : index
    %c0_15 = arith.constant 0 : index
    %18 = vector.load %arg7[%c0_14, %c0_15] : memref<32x32xbf16, #tpu.memory_space<vmem>>, vector<32x32xbf16>
    %c0_16 = arith.constant 0 : index
    %c0_17 = arith.constant 0 : index
    %19 = vector.load %arg8[%c0_16, %c0_17] : memref<1x32xf32, #tpu.memory_space<vmem>>, vector<1x32xf32>
    %20 = arith.truncf %17 : vector<16x32xf32> to vector<16x32xbf16>
    %cst_18 = arith.constant dense<0.000000e+00> : vector<16x32xf32>
    %21 = tpu.matmul %20, %18, %cst_18 {dimension_numbers = #tpu.dot_dimension_numbers<[1], [0], [0], [1], [0, 0, 1, 1], [], []>} : vector<16x32xbf16>, vector<32x32xbf16>, vector<16x32xf32> -> vector<16x32xf32>
    %22 = vector.broadcast %19 : vector<1x32xf32> to vector<16x32xf32>
    %23 = arith.addf %21, %22 : vector<16x32xf32>
    %cst_19 = arith.constant 0.000000e+00 : f32
    %24 = vector.broadcast %cst_19 : f32 to vector<16x32xf32>
    %25 = arith.maximumf %23, %24 : vector<16x32xf32>
    %26 = vector.shape_cast %25 : vector<16x32xf32> to vector<4x4x32xf32>
    %cst_20 = arith.constant dense<0xFF800000> : vector<4x32xf32>
    %27 = vector.multi_reduction <maximumf>, %26, %cst_20 [1] : vector<4x4x32xf32> to vector<4x32xf32>
    %28 = tpu.transpose %27, [1, 0] : vector<4x32xf32> -> vector<32x4xf32>
    %c0_21 = arith.constant 0 : index
    %c0_22 = arith.constant 0 : index
    %c0_23 = arith.constant 0 : index
    %29 = vector.load %arg9[%c0_21, %c0_22, %c0_23] : memref<1x32x4xf32, #tpu.memory_space<vmem>>, vector<1x32x4xf32>
    %30 = vector.shape_cast %29 : vector<1x32x4xf32> to vector<32x4xf32>
    %31 = vector.shape_cast %28 : vector<32x4xf32> to vector<1x32x4xf32>
    tpu.vector_store %arg9[%c0_21, %c0_22, %c0_23], %31 {strides = array<i32>} : memref<1x32x4xf32, #tpu.memory_space<vmem>>, vector<1x32x4xf32>,
    return
  }
  func.func @transform_0(%arg0: i32, %arg1: i32) -> (i32, i32, i32, i32) {
    %c0_i32 = arith.constant 0 : i32
    %c0_i32_0 = arith.constant 0 : i32
    %c0_i32_1 = arith.constant 0 : i32
    return %arg0, %arg1, %c0_i32, %c0_i32_0 : i32, i32, i32, i32
  }
  func.func @transform_1(%arg0: i32, %arg1: i32) -> (i32, i32) {
    %c0_i32 = arith.constant 0 : i32
    %c0_i32_0 = arith.constant 0 : i32
    %c0_i32_1 = arith.constant 0 : i32
    return %c0_i32, %c0_i32_0 : i32, i32
  }
  func.func @transform_2(%arg0: i32, %arg1: i32) -> (i32, i32) {
    %c0_i32 = arith.constant 0 : i32
    %c0_i32_0 = arith.constant 0 : i32
    %c0_i32_1 = arith.constant 0 : i32
    return %c0_i32, %c0_i32_0 : i32, i32
  }
  func.func @transform_3(%arg0: i32, %arg1: i32) -> (i32, i32) {
    %c0_i32 = arith.constant 0 : i32
    %c0_i32_0 = arith.constant 0 : i32
    %c0_i32_1 = arith.constant 0 : i32
    return %c0_i32, %c0_i32_0 : i32, i32
  }
  func.func @transform_4(%arg0: i32, %arg1: i32) -> (i32, i32) {
    %c0_i32 = arith.constant 0 : i32
    %c0_i32_0 = arith.constant 0 : i32
    %c0_i32_1 = arith.constant 0 : i32
    return %c0_i32, %c0_i32_0 : i32, i32
  }
  func.func @transform_5(%arg0: i32, %arg1: i32) -> (i32, i32) {
    %c0_i32 = arith.constant 0 : i32
    %c0_i32_0 = arith.constant 0 : i32
    %c0_i32_1 = arith.constant 0 : i32
    return %c0_i32, %c0_i32_0 : i32, i32
  }
  func.func @transform_6(%arg0: i32, %arg1: i32) -> (i32, i32) {
    %c0_i32 = arith.constant 0 : i32
    %c0_i32_0 = arith.constant 0 : i32
    %c0_i32_1 = arith.constant 0 : i32
    return %c0_i32, %c0_i32_0 : i32, i32
  }
  func.func @transform_7(%arg0: i32, %arg1: i32) -> (i32, i32, i32) {
    %c0_i32 = arith.constant 0 : i32
    %c0_i32_0 = arith.constant 0 : i32
    return %arg0, %c0_i32, %arg1 : i32, i32, i32
  }
}

</mosaic_0001>

<llo_original>
// kernel: custom-call.28
$region0: #{custom-call.28}
  %s0 = inlined_call_operand.vmem [shape: f32[2,64], index: 0, kind: output, shape index: {}]

// kernel: custom-call.29
$region0: #{custom-call.29}
  %s0 = inlined_call_operand.vmem [shape: f32[2,16], index: 0, kind: output, shape index: {}]

// kernel: custom-call.30
$region0: #{custom-call.30}
  %s0 = inlined_call_operand.vmem [shape: f32[2,8], index: 0, kind: output, shape index: {}]

// kernel: keypoint_encoder_forward.3
$region0: #{keypoint_encoder_forward.3}
  #allocation0 [shape = 'u32[]', space=smem, size = 0x4, offset = 0x4, fixed_abs, tag = 'smem constant byte address 0x4 - core index']
  #allocation1 [shape = 'u32[144,128]{1,0:T(1,128)}', space=vmem, size = 0x12000, scoped, tag = 'internal scratch']
  %s0 = inlined_call_operand.vmem [shape: bf16[2,16,8,8], index: 0, kind: input, shape index: {}]
  %s1 = inlined_call_operand.vmem [shape: bf16[8,16], index: 1, kind: input, shape index: {}]
  %s2 = inlined_call_operand.vmem [shape: f32[1,16], index: 2, kind: input, shape index: {}]
  %s3 = inlined_call_operand.vmem [shape: bf16[16,16], index: 3, kind: input, shape index: {}]
  %s4 = inlined_call_operand.vmem [shape: f32[1,16], index: 4, kind: input, shape index: {}]
  %s5 = inlined_call_operand.vmem [shape: bf16[16,32], index: 5, kind: input, shape index: {}]
  %s6 = inlined_call_operand.vmem [shape: f32[1,32], index: 6, kind: input, shape index: {}]
  %s7 = inlined_call_operand.vmem [shape: f32[2,32,16], index: 7, kind: output, shape index: {}]
  %s8 = sld [smem:[#allocation0]]
  $region61: #{keypoint_encoder_forward.3} parent=0
    _
  %s10 = ssub.s32 1, %s8
  %s11 = scalar_select 0, %s10, %s8
  loop: start=0, step=1, limit=4
  $region2: #{keypoint_encoder_forward.3} parent=0 // loop_pre_header
    _
  $region3: #{keypoint_encoder_forward.3} parent=0 // loop_header
    %s13 = sphi 0, %s17
    %p14 = scmp.ge.s32.totalorder %s13, 4
    %s20 = sphi 0, %s32
    %s21 = sphi 0, %s28
    %s22 = sphi 0, %s20
    %s23 = sphi 0, %s21
    %s24 = sphi 0, %s22
    %s25 = sphi 0, %s23
    %s37 = sphi 0, %s39
    %s40 = sphi 0, %s37
    %s41 = sphi 0, %s40
    %s57 = sphi 0, %s41
    %s61 = sphi 0, %s61
    %s63 = sphi 0, %s61
    %s64 = sphi 0, %s63
    %s78 = sphi 0, %s64
    %s82 = sphi 0, %s82
    %s84 = sphi 0, %s82
    %s85 = sphi 0, %s84
    %s99 = sphi 0, %s85
    %s103 = sphi 0, %s103
    %s105 = sphi 0, %s103
    %s106 = sphi 0, %s105
    %s120 = sphi 0, %s106
    %s124 = sphi 0, %s124
    %s126 = sphi 0, %s124
    %s127 = sphi 0, %s126
    %s141 = sphi 0, %s127
    %s145 = sphi 0, %s145
    %s147 = sphi 0, %s145
    %s148 = sphi 0, %s147
    %s162 = sphi 0, %s148
    %s166 = sphi 0, %s166
    %s168 = sphi 0, %s166
    %s169 = sphi 0, %s168
    %s183 = sphi 0, %s169
    %s191 = sphi 0, %s193
    %s194 = sphi 0, %s191
    %s195 = sphi 0, %s194
    %s211 = sphi 0, %s195
  $region4: #{keypoint_encoder_forward.3} parent=0 // loop_header_branch
    %16 = sbr.rel (%p14) target = $region8
  $region5: #{keypoint_encoder_forward.3} parent=0 // loop_body
    %s18 = ssub.s32 %s13, 1
    %s19 = ssub.s32 %s13, 2
    %s26 = sadd.s32 1, %s21
    %p27 = scmp.ge.s32.totalorder %s26, 1
    %s28 = scalar_select %p27, 0, %s26
    %s29 = sadd.s32 1, %s20
    %s30 = scalar_select %p27, %s29, %s20
    %p31 = scmp.ge.s32.totalorder %s30, 2
    %s32 = scalar_select %p31, 0, %s30
    %s33 = ssub.s32 %s20, %s32
    %s34 = ssub.s32 %s21, %s28
    %s35 = sor.u32 %s33, %s34
    %p36 = scmp.eq.s32.totalorder %s35, 0
    %s38 = sadd.s32 %s37, 1
    %s39 = scalar_select %p36, %s37, %s38
    %p42 = pneg %p36
    %p43 = scmp.eq.s32.totalorder %s13, 1
    %p44 = por %p42, %p43
    %p45 = scmp.ne.s32.totalorder %s37, %s40
    %p46 = scmp.eq.s32.totalorder %s13, 0
    %p47 = por %p45, %p46
    %p48 = scmp.ne.s32.totalorder %s37, %s40
    %p49 = scmp.eq.s32.totalorder %s18, 1
    %p50 = por %p48, %p49
    %p51 = scmp.ne.s32.totalorder %s40, %s41
    %p52 = scmp.eq.s32.totalorder %s18, 0
    %p53 = por %p51, %p52
    %p54 = scmp.ne.s32.totalorder %s40, %s41
    %p55 = scmp.eq.s32.totalorder %s19, 1
    %p56 = por %p54, %p55
    %p58 = scmp.ne.s32.totalorder %s41, %s57
    %p59 = scmp.eq.s32.totalorder %s19, 0
    %p60 = por %p58, %p59
    %s62 = sadd.s32 %s61, 1
    %p65 = scmp.eq.s32.totalorder %s13, 1
    %p66 = scmp.ne.s32.totalorder %s61, %s63
    %p67 = scmp.eq.s32.totalorder %s13, 0
    %p68 = por %p66, %p67
    %p69 = scmp.ne.s32.totalorder %s61, %s63
    %p70 = scmp.eq.s32.totalorder %s18, 1
    %p71 = por %p69, %p70
    %p72 = scmp.ne.s32.totalorder %s63, %s64
    %p73 = scmp.eq.s32.totalorder %s18, 0
    %p74 = por %p72, %p73
    %p75 = scmp.ne.s32.totalorder %s63, %s64
    %p76 = scmp.eq.s32.totalorder %s19, 1
    %p77 = por %p75, %p76
    %p79 = scmp.ne.s32.totalorder %s64, %s78
    %p80 = scmp.eq.s32.totalorder %s19, 0
    %p81 = por %p79, %p80
    %s83 = sadd.s32 %s82, 1
    %p86 = scmp.eq.s32.totalorder %s13, 1
    %p87 = scmp.ne.s32.totalorder %s82, %s84
    %p88 = scmp.eq.s32.totalorder %s13, 0
    %p89 = por %p87, %p88
    %p90 = scmp.ne.s32.totalorder %s82, %s84
    %p91 = scmp.eq.s32.totalorder %s18, 1
    %p92 = por %p90, %p91
    %p93 = scmp.ne.s32.totalorder %s84, %s85
    %p94 = scmp.eq.s32.totalorder %s18, 0
    %p95 = por %p93, %p94
    %p96 = scmp.ne.s32.totalorder %s84, %s85
    %p97 = scmp.eq.s32.totalorder %s19, 1
    %p98 = por %p96, %p97
    %p100 = scmp.ne.s32.totalorder %s85, %s99
    %p101 = scmp.eq.s32.totalorder %s19, 0
    %p102 = por %p100, %p101
    %s104 = sadd.s32 %s103, 1
    %p107 = scmp.eq.s32.totalorder %s13, 1
    %p108 = scmp.ne.s32.totalorder %s103, %s105
    %p109 = scmp.eq.s32.totalorder %s13, 0
    %p110 = por %p108, %p109
    %p111 = scmp.ne.s32.totalorder %s103, %s105
    %p112 = scmp.eq.s32.totalorder %s18, 1
    %p113 = por %p111, %p112
    %p114 = scmp.ne.s32.totalorder %s105, %s106
    %p115 = scmp.eq.s32.totalorder %s18, 0
    %p116 = por %p114, %p115
    %p117 = scmp.ne.s32.totalorder %s105, %s106
    %p118 = scmp.eq.s32.totalorder %s19, 1
    %p119 = por %p117, %p118
    %p121 = scmp.ne.s32.totalorder %s106, %s120
    %p122 = scmp.eq.s32.totalorder %s19, 0
    %p123 = por %p121, %p122
    %s125 = sadd.s32 %s124, 1
    %p128 = scmp.eq.s32.totalorder %s13, 1
    %p129 = scmp.ne.s32.totalorder %s124, %s126
    %p130 = scmp.eq.s32.totalorder %s13, 0
    %p131 = por %p129, %p130
    %p132 = scmp.ne.s32.totalorder %s124, %s126
    %p133 = scmp.eq.s32.totalorder %s18, 1
    %p134 = por %p132, %p133
    %p135 = scmp.ne.s32.totalorder %s126, %s127
    %p136 = scmp.eq.s32.totalorder %s18, 0
    %p137 = por %p135, %p136
    %p138 = scmp.ne.s32.totalorder %s126, %s127
    %p139 = scmp.eq.s32.totalorder %s19, 1
    %p140 = por %p138, %p139
    %p142 = scmp.ne.s32.totalorder %s127, %s141
    %p143 = scmp.eq.s32.totalorder %s19, 0
    %p144 = por %p142, %p143
    %s146 = sadd.s32 %s145, 1
    %p149 = scmp.eq.s32.totalorder %s13, 1
    %p150 = scmp.ne.s32.totalorder %s145, %s147
    %p151 = scmp.eq.s32.totalorder %s13, 0
    %p152 = por %p150, %p151
    %p153 = scmp.ne.s32.totalorder %s145, %s147
    %p154 = scmp.eq.s32.totalorder %s18, 1
    %p155 = por %p153, %p154
    %p156 = scmp.ne.s32.totalorder %s147, %s148
    %p157 = scmp.eq.s32.totalorder %s18, 0
    %p158 = por %p156, %p157
    %p159 = scmp.ne.s32.totalorder %s147, %s148
    %p160 = scmp.eq.s32.totalorder %s19, 1
    %p161 = por %p159, %p160
    %p163 = scmp.ne.s32.totalorder %s148, %s162
    %p164 = scmp.eq.s32.totalorder %s19, 0
    %p165 = por %p163, %p164
    %s167 = sadd.s32 %s166, 1
    %p170 = scmp.eq.s32.totalorder %s13, 1
    %p171 = scmp.ne.s32.totalorder %s166, %s168
    %p172 = scmp.eq.s32.totalorder %s13, 0
    %p173 = por %p171, %p172
    %p174 = scmp.ne.s32.totalorder %s166, %s168
    %p175 = scmp.eq.s32.totalorder %s18, 1
    %p176 = por %p174, %p175
    %p177 = scmp.ne.s32.totalorder %s168, %s169
    %p178 = scmp.eq.s32.totalorder %s18, 0
    %p179 = por %p177, %p178
    %p180 = scmp.ne.s32.totalorder %s168, %s169
    %p181 = scmp.eq.s32.totalorder %s19, 1
    %p182 = por %p180, %p181
    %p184 = scmp.ne.s32.totalorder %s169, %s183
    %p185 = scmp.eq.s32.totalorder %s19, 0
    %p186 = por %p184, %p185
    %s187 = ssub.s32 %s20, %s32
    %s188 = ssub.s32 %s21, %s28
    %s189 = sor.u32 %s187, %s188
    %p190 = scmp.eq.s32.totalorder %s189, 0
    %s192 = sadd.s32 %s191, 1
    %s193 = scalar_select %p190, %s191, %s192
    %p196 = pneg %p190
    %p197 = scmp.eq.s32.totalorder %s13, 1
    %p198 = por %p196, %p197
    %p199 = scmp.ne.s32.totalorder %s191, %s194
    %p200 = scmp.eq.s32.totalorder %s13, 0
    %p201 = por %p199, %p200
    %p202 = scmp.ne.s32.totalorder %s191, %s194
    %p203 = scmp.eq.s32.totalorder %s18, 1
    %p204 = por %p202, %p203
    %p205 = scmp.ne.s32.totalorder %s194, %s195
    %p206 = scmp.eq.s32.totalorder %s18, 0
    %p207 = por %p205, %p206
    %p208 = scmp.ne.s32.totalorder %s194, %s195
    %p209 = scmp.eq.s32.totalorder %s19, 1
    %p210 = por %p208, %p209
    %p212 = scmp.ne.s32.totalorder %s195, %s211
    %p213 = scmp.eq.s32.totalorder %s19, 0
    %p214 = por %p212, %p213
    %p215 = scmp.le.s32.totalorder 1, %s13
    %p216 = scmp.lt.s32.totalorder %s13, 3
    %p217 = pnand %p215, %p216
    %p218 = pneg %p217
    // Predicated region
    $region9: #{keypoint_encoder_forward.3} parent=5 // pred_check
      _
    $region10: #{keypoint_encoder_forward.3} parent=5 // pred_check_branch
      %220 = sbr.rel (%p217) target = $region12
    $region11: #{keypoint_encoder_forward.3} parent=5 // pred_region
      %s221 = ssub.s32 %s13, 1
      // Predicated region
      $region13: #{keypoint_encoder_forward.3} parent=11 // pred_check
        %p222 = pneg %p74
      $region14: #{keypoint_encoder_forward.3} parent=11 // pred_check_branch
        %224 = sbr.rel (%p222) target = $region16
      $region15: #{keypoint_encoder_forward.3} parent=11 // pred_region
        _
      $region16: #{keypoint_encoder_forward.3} parent=11 // pred_fallthru
        _
      // Predicated region
      $region17: #{keypoint_encoder_forward.3} parent=11 // pred_check
        %p225 = pneg %p95
      $region18: #{keypoint_encoder_forward.3} parent=11 // pred_check_branch
        %227 = sbr.rel (%p225) target = $region20
      $region19: #{keypoint_encoder_forward.3} parent=11 // pred_region
        _
      $region20: #{keypoint_encoder_forward.3} parent=11 // pred_fallthru
        _
      // Predicated region
      $region21: #{keypoint_encoder_forward.3} parent=11 // pred_check
        %p228 = pneg %p116
      $region22: #{keypoint_encoder_forward.3} parent=11 // pred_check_branch
        %230 = sbr.rel (%p228) target = $region24
      $region23: #{keypoint_encoder_forward.3} parent=11 // pred_region
        _
      $region24: #{keypoint_encoder_forward.3} parent=11 // pred_fallthru
        _
      // Predicated region
      $region25: #{keypoint_encoder_forward.3} parent=11 // pred_check
        %p231 = pneg %p137
      $region26: #{keypoint_encoder_forward.3} parent=11 // pred_check_branch
        %233 = sbr.rel (%p231) target = $region28
      $region27: #{keypoint_encoder_forward.3} parent=11 // pred_region
        _
      $region28: #{keypoint_encoder_forward.3} parent=11 // pred_fallthru
        _
      // Predicated region
      $region29: #{keypoint_encoder_forward.3} parent=11 // pred_check
        %p234 = pneg %p158
      $region30: #{keypoint_encoder_forward.3} parent=11 // pred_check_branch
        %236 = sbr.rel (%p234) target = $region32
      $region31: #{keypoint_encoder_forward.3} parent=11 // pred_region
        _
      $region32: #{keypoint_encoder_forward.3} parent=11 // pred_fallthru
        _
      // Predicated region
      $region33: #{keypoint_encoder_forward.3} parent=11 // pred_check
        %p237 = pneg %p179
      $region34: #{keypoint_encoder_forward.3} parent=11 // pred_check_branch
        %239 = sbr.rel (%p237) target = $region36
      $region35: #{keypoint_encoder_forward.3} parent=11 // pred_region
        _
      $region36: #{keypoint_encoder_forward.3} parent=11 // pred_fallthru
        _
    $region12: #{keypoint_encoder_forward.3} parent=5 // pred_fallthru
      _
    %p240 = scmp.lt.s32.totalorder %s13, 2
    // Predicated region
    $region37: #{keypoint_encoder_forward.3} parent=5 // pred_check
      %p241 = pneg %p240
    $region38: #{keypoint_encoder_forward.3} parent=5 // pred_check_branch
      %243 = sbr.rel (%p241) target = $region40
    $region39: #{keypoint_encoder_forward.3} parent=5 // pred_region
      // Predicated region
      $region41: #{keypoint_encoder_forward.3} parent=39 // pred_check
        %p244 = pneg %p47
      $region42: #{keypoint_encoder_forward.3} parent=39 // pred_check_branch
        %246 = sbr.rel (%p244) target = $region44
      $region43: #{keypoint_encoder_forward.3} parent=39 // pred_region
        %s247 = smul.u32 16, %s21
        %p248 = scmp.lt.s32.totalorder %s20, 1
        %s249 = scalar_select %p248, %s20, 1
        %p250 = scmp.lt.s32.totalorder %s247, 15
        %s251 = scalar_select %p250, %s247, 15
        %s252 = smul.addr %s249, 16
        %s253 = sadd.s32 %s251, %s252
        %s254 = smul.addr %s253, 4
        %s255 = scalar_lea.vmem %s0, %s254
        %s256 = smul.u32 16, %s21
      $region44: #{keypoint_encoder_forward.3} parent=39 // pred_fallthru
        _
    $region40: #{keypoint_encoder_forward.3} parent=5 // pred_fallthru
      _
    %p257 = scmp.le.s32.totalorder 1, %s13
    %p258 = scmp.lt.s32.totalorder %s13, 3
    %p259 = pnand %p257, %p258
    %p260 = pneg %p259
    // Predicated region
    $region45: #{keypoint_encoder_forward.3} parent=5 // pred_check
      _
    $region46: #{keypoint_encoder_forward.3} parent=5 // pred_check_branch
      %262 = sbr.rel (%p259) target = $region48
    $region47: #{keypoint_encoder_forward.3} parent=5 // pred_region
      %s263 = ssub.s32 %s13, 1
      %s264 = smul.u32 16, %s23
      %p265 = scmp.lt.s32.totalorder %s22, 1
      %s266 = scalar_select %p265, %s22, 1
      %p267 = scmp.lt.s32.totalorder %s264, 15
      %s268 = scalar_select %p267, %s264, 15
      %s269 = smul.addr %s266, 16
      %s270 = sadd.s32 %s268, %s269
      %s271 = smul.addr %s270, 4
      %s272 = scalar_lea.vmem %s0, %s271
      %p273 = pneg %p53
      %p274 = pneg %p50
      %p275 = pneg %p74
      %p276 = pneg %p71
      %p277 = pneg %p95
      %p278 = pneg %p92
      %p279 = pneg %p116
      %p280 = pneg %p113
      %p281 = pneg %p137
      %p282 = pneg %p134
      %p283 = pneg %p158
      %p284 = pneg %p155
      %p285 = pneg %p179
      %p286 = pneg %p176
      %p287 = pneg %p207
      %p288 = pneg %p204
      %p289 = scmp.lt.s32.totalorder %s22, 1
      %s290 = scalar_select %p289, %s22, 1
      %p291 = scmp.lt.s32.totalorder %s23, 0
      %s292 = scalar_select %p291, %s23, 0
      %s293 = smul.addr %s290, 4
      %s294 = sadd.s32 %s292, %s293
      %s295 = smul.addr %s294, 8
      %s296 = scalar_lea.vmem %s7, %s295
      %s297 = smul.u32 16, %s23
      %p298 = scmp.lt.s32.totalorder %s22, 1
      %s299 = scalar_select %p298, %s22, 1
      %p300 = scmp.lt.s32.totalorder %s297, 15
      %s301 = scalar_select %p300, %s297, 15
      %s302 = smul.addr %s299, 16
      %s303 = sadd.s32 %s301, %s302
      %s304 = smul.addr %s303, 4
      %s305 = scalar_lea.vmem %s0, %s304
      %s306 = smul.u32 16, %s23
      %p307 = scmp.lt.s32.totalorder %s22, 1
      %s308 = scalar_select %p307, %s22, 1
      %p309 = scmp.lt.s32.totalorder %s23, 0
      %s310 = scalar_select %p309, %s23, 0
      %s311 = smul.addr %s308, 4
      %s312 = sadd.s32 %s310, %s311
      %s313 = smul.addr %s312, 8
      %s314 = scalar_lea.vmem %s7, %s313
      %v316 = vld [vmem:[%s305] sm:$0xf]
      %v317 = vld [vmem:[%s305 + $0x4] sm:$0xf]
      %v318 = vld [vmem:[%s305 + $0x8] sm:$0xf]
      %v319 = vld [vmem:[%s305 + $0xc] sm:$0xf]
      %v320 = vld [vmem:[%s305 + $0x10] sm:$0xf]
      %v321 = vld [vmem:[%s305 + $0x14] sm:$0xf]
      %v322 = vld [vmem:[%s305 + $0x18] sm:$0xf]
      %v323 = vld [vmem:[%s305 + $0x1c] sm:$0xf]
      %v324 = vld [vmem:[%s305 + $0x20] sm:$0xf]
      %v325 = vld [vmem:[%s305 + $0x24] sm:$0xf]
      %v326 = vld [vmem:[%s305 + $0x28] sm:$0xf]
      %v327 = vld [vmem:[%s305 + $0x2c] sm:$0xf]
      %v328 = vld [vmem:[%s305 + $0x30] sm:$0xf]
      %v329 = vld [vmem:[%s305 + $0x34] sm:$0xf]
      %v330 = vld [vmem:[%s305 + $0x38] sm:$0xf]
      %v331 = vld [vmem:[%s305 + $0x3c] sm:$0xf]
      %v332 = vld [vmem:[%s1] sm:$0xf]
      %v333 = vld [vmem:[%s2] sm:$0x1]
      %v335 = vlaneseq
      %v336 = vshrl.u32 %v335, 7
      %v337 = vsub.s32 0, %v336
      %v338 = vrot.slane %v333, %v337
      %v356 = vunpack.c.l.b16 %v316
      %v357 = vunpack.c.l.b16 %v317
      %v358 = vunpack.c.l.b16 %v318
      %v359 = vunpack.c.l.b16 %v319
      %v360 = vunpack.c.l.b16 %v320
      %v361 = vunpack.c.l.b16 %v321
      %v362 = vunpack.c.l.b16 %v322
      %v363 = vunpack.c.l.b16 %v323
      %v364 = vunpack.c.l.b16 %v324
      %v365 = vunpack.c.l.b16 %v325
      %v366 = vunpack.c.l.b16 %v326
      %v367 = vunpack.c.l.b16 %v327
      %v368 = vunpack.c.l.b16 %v328
      %v369 = vunpack.c.l.b16 %v329
      %v370 = vunpack.c.l.b16 %v330
      %v371 = vunpack.c.l.b16 %v331
      %v372 = vpack.c.b16 %v357, %v356
      %v373 = vpack.c.b16 %v359, %v358
      %v374 = vpack.c.b16 %v361, %v360
      %v375 = vpack.c.b16 %v363, %v362
      %v376 = vpack.c.b16 %v365, %v364
      %v377 = vpack.c.b16 %v367, %v366
      %v378 = vpack.c.b16 %v369, %v368
      %v379 = vpack.c.b16 %v371, %v370
      %vm380 = vcmask 64512
      %v382 = vsel %vm380, %v372, 0
      %v385 = vsel %vm380, %v373, 0
      %v388 = vsel %vm380, %v374, 0
      %v391 = vsel %vm380, %v375, 0
      %v394 = vsel %vm380, %v376, 0
      %v397 = vsel %vm380, %v377, 0
      %v400 = vsel %vm380, %v378, 0
      %v403 = vsel %vm380, %v379, 0
      %vm405 = vcmask 1043456
      %v407 = vsel %vm405, %v332, 0
      %409 = vmatprep.subr.bf16.mxu0 0
      %410 = vmatpush1.bf16.msra.mxu0 %v407
      %411 = vmatprep.subr.bf16.mxu0 0
      %412 = vmatpush1.bf16.msra.mxu0 0
      %413 = vmatprep.subr.bf16.mxu0 0
      %414 = vmatpush1.bf16.msra.mxu0 0
      %415 = vmatprep.subr.bf16.mxu0 0
      %416 = vmatpush1.bf16.msra.mxu0 0
      %417 = vmatprep.subr.bf16.mxu0 0
      %418 = vmatpush1.bf16.msra.mxu0 0
      %419 = vmatprep.subr.bf16.mxu0 0
      %420 = vmatpush1.bf16.msra.mxu0 0
      %421 = vmatprep.subr.bf16.mxu0 0
      %422 = vmatpush1.bf16.msra.mxu0 0
      %423 = vmatprep.subr.bf16.mxu0 0
      %424 = vmatpush1.bf16.msra.mxu0 0
      %425 = vmatprep.subr.bf16.mxu0 0
      %426 = vmatpush1.bf16.msra.mxu0 0
      %427 = vmatprep.subr.bf16.mxu0 0
      %428 = vmatpush1.bf16.msra.mxu0 0
      %429 = vmatprep.subr.bf16.mxu0 0
      %430 = vmatpush1.bf16.msra.mxu0 0
      %431 = vmatprep.subr.bf16.mxu0 0
      %432 = vmatpush1.bf16.msra.mxu0 0
      %433 = vmatprep.subr.bf16.mxu0 0
      %434 = vmatpush1.bf16.msra.mxu0 0
      %435 = vmatprep.subr.bf16.mxu0 0
      %436 = vmatpush1.bf16.msra.mxu0 0
      %437 = vmatprep.subr.bf16.mxu0 0
      %438 = vmatpush1.bf16.msra.mxu0 0
      %439 = vmatprep.subr.bf16.mxu0 0
      %440 = vmatpush1.bf16.msra.mxu0 0
      %441 = vmatprep.mubr.bf16.mxu0 0
      %442 = vmatmul.mubr.bf16.gmra.mrb[0].mxu0 %v382
      %v443 = vpop.f32.mrb[0].mxu0
      %v444 = vadd.f32 %v338, %v443
      %v445 = vpop.f32.mrb[0].mxu0
      %v446 = vpop.f32.mrb[0].mxu0
      %v447 = vadd.f32 %v338, %v446
      %v448 = vpop.f32.mrb[0].mxu0
      %449 = vmatprep.mubr.bf16.mxu0 0
      %450 = vmatmul.mubr.bf16.gmra.mrb[0].mxu0 %v385
      %v451 = vpop.f32.mrb[0].mxu0
      %v452 = vadd.f32 %v338, %v451
      %v453 = vpop.f32.mrb[0].mxu0
      %v454 = vpop.f32.mrb[0].mxu0
      %v455 = vadd.f32 %v338, %v454
      %v456 = vpop.f32.mrb[0].mxu0
      %457 = vmatprep.mubr.bf16.mxu0 0
      %458 = vmatmul.mubr.bf16.gmra.mrb[0].mxu0 %v388
      %v459 = vpop.f32.mrb[0].mxu0
      %v460 = vadd.f32 %v338, %v459
      %v461 = vpop.f32.mrb[0].mxu0
      %v462 = vpop.f32.mrb[0].mxu0
      %v463 = vadd.f32 %v338, %v462
      %v464 = vpop.f32.mrb[0].mxu0
      %465 = vmatprep.mubr.bf16.mxu0 0
      %466 = vmatmul.mubr.bf16.gmra.mrb[0].mxu0 %v391
      %v467 = vpop.f32.mrb[0].mxu0
      %v468 = vadd.f32 %v338, %v467
      %v469 = vpop.f32.mrb[0].mxu0
      %v470 = vpop.f32.mrb[0].mxu0
      %v471 = vadd.f32 %v338, %v470
      %v472 = vpop.f32.mrb[0].mxu0
      %473 = vmatprep.mubr.bf16.mxu0 0
      %474 = vmatmul.mubr.bf16.gmra.mrb[0].mxu0 %v394
      %v475 = vpop.f32.mrb[0].mxu0
      %v476 = vadd.f32 %v338, %v475
      %v477 = vpop.f32.mrb[0].mxu0
      %v478 = vpop.f32.mrb[0].mxu0
      %v479 = vadd.f32 %v338, %v478
      %v480 = vpop.f32.mrb[0].mxu0
      %481 = vmatprep.mubr.bf16.mxu0 0
      %482 = vmatmul.mubr.bf16.gmra.mrb[0].mxu0 %v397
      %v483 = vpop.f32.mrb[0].mxu0
      %v484 = vadd.f32 %v338, %v483
      %v485 = vpop.f32.mrb[0].mxu0
      %v486 = vpop.f32.mrb[0].mxu0
      %v487 = vadd.f32 %v338, %v486
      %v488 = vpop.f32.mrb[0].mxu0
      %489 = vmatprep.mubr.bf16.mxu0 0
      %490 = vmatmul.mubr.bf16.gmra.mrb[0].mxu0 %v400
      %v491 = vpop.f32.mrb[0].mxu0
      %v492 = vadd.f32 %v338, %v491
      %v493 = vpop.f32.mrb[0].mxu0
      %v494 = vpop.f32.mrb[0].mxu0
      %v495 = vadd.f32 %v338, %v494
      %v496 = vpop.f32.mrb[0].mxu0
      %497 = vmatprep.mubr.bf16.mxu0 0
      %498 = vmatmul.mubr.bf16.gmra.mrb[0].mxu0 %v403
      %v499 = vpop.f32.mrb[0].mxu0
      %v500 = vadd.f32 %v338, %v499
      %v501 = vpop.f32.mrb[0].mxu0
      %v502 = vpop.f32.mrb[0].mxu0
      %v503 = vadd.f32 %v338, %v502
      %v504 = vpop.f32.mrb[0].mxu0
      %505 = vdwg.mxu0
      %v506 = vmax.f32 %v444, 0.0
      %v507 = vmax.f32 %v447, 0.0
      %v508 = vmax.f32 %v452, 0.0
      %v509 = vmax.f32 %v455, 0.0
      %v510 = vmax.f32 %v460, 0.0
      %v511 = vmax.f32 %v463, 0.0
      %v512 = vmax.f32 %v468, 0.0
      %v513 = vmax.f32 %v471, 0.0
      %v514 = vmax.f32 %v476, 0.0
      %v515 = vmax.f32 %v479, 0.0
      %v516 = vmax.f32 %v484, 0.0
      %v517 = vmax.f32 %v487, 0.0
      %v518 = vmax.f32 %v492, 0.0
      %v519 = vmax.f32 %v495, 0.0
      %v520 = vmax.f32 %v500, 0.0
      %v521 = vmax.f32 %v503, 0.0
      %v522 = vld [vmem:[%s3] sm:$0xf]
      %v523 = vld [vmem:[%s3 + $0x4] sm:$0xf]
      %v524 = vld [vmem:[%s4] sm:$0x1]
      %v525 = vpack.c.bf16 %v507, %v506
      %v526 = vpack.c.bf16 %v509, %v508
      %v527 = vpack.c.bf16 %v511, %v510
      %v528 = vpack.c.bf16 %v513, %v512
      %v529 = vpack.c.bf16 %v515, %v514
      %v530 = vpack.c.bf16 %v517, %v516
      %v531 = vpack.c.bf16 %v519, %v518
      %v532 = vpack.c.bf16 %v521, %v520
      %v534 = vlaneseq
      %v535 = vshrl.u32 %v534, 7
      %v536 = vsub.s32 0, %v535
      %v537 = vrot.slane %v524, %v536
      %v541 = vunpack.c.l.b16 %v522
      %v542 = vunpack.c.l.b16 %v523
      %v543 = vpack.c.b16 %v542, %v541
      %vm545 = vcmask 130048
      %v547 = vsel %vm545, %v525, 0
      %v550 = vsel %vm545, %v526, 0
      %v553 = vsel %vm545, %v527, 0
      %v556 = vsel %vm545, %v528, 0
      %v559 = vsel %vm545, %v529, 0
      %v562 = vsel %vm545, %v530, 0
      %v565 = vsel %vm545, %v531, 0
      %v568 = vsel %vm545, %v532, 0
      %570 = vmatprep.subr.bf16.mxu0 0
      %571 = vmatpush1.bf16.msra.mxu0 %v543
      %572 = vmatprep.subr.bf16.mxu0 0
      %573 = vmatpush1.bf16.msra.mxu0 0
      %574 = vmatprep.subr.bf16.mxu0 0
      %575 = vmatpush1.bf16.msra.mxu0 0
      %576 = vmatprep.subr.bf16.mxu0 0
      %577 = vmatpush1.bf16.msra.mxu0 0
      %578 = vmatprep.subr.bf16.mxu0 0
      %579 = vmatpush1.bf16.msra.mxu0 0
      %580 = vmatprep.subr.bf16.mxu0 0
      %581 = vmatpush1.bf16.msra.mxu0 0
      %582 = vmatprep.subr.bf16.mxu0 0
      %583 = vmatpush1.bf16.msra.mxu0 0
      %584 = vmatprep.subr.bf16.mxu0 0
      %585 = vmatpush1.bf16.msra.mxu0 0
      %586 = vmatprep.subr.bf16.mxu0 0
      %587 = vmatpush1.bf16.msra.mxu0 0
      %588 = vmatprep.subr.bf16.mxu0 0
      %589 = vmatpush1.bf16.msra.mxu0 0
      %590 = vmatprep.subr.bf16.mxu0 0
      %591 = vmatpush1.bf16.msra.mxu0 0
      %592 = vmatprep.subr.bf16.mxu0 0
      %593 = vmatpush1.bf16.msra.mxu0 0
      %594 = vmatprep.subr.bf16.mxu0 0
      %595 = vmatpush1.bf16.msra.mxu0 0
      %596 = vmatprep.subr.bf16.mxu0 0
      %597 = vmatpush1.bf16.msra.mxu0 0
      %598 = vmatprep.subr.bf16.mxu0 0
      %599 = vmatpush1.bf16.msra.mxu0 0
      %600 = vmatprep.subr.bf16.mxu0 0
      %601 = vmatpush1.bf16.msra.mxu0 0
      %602 = vmatprep.mubr.bf16.mxu0 0
      %603 = vmatmul.mubr.bf16.gmra.mrb[0].mxu0 %v547
      %v604 = vpop.f32.mrb[0].mxu0
      %v605 = vadd.f32 %v537, %v604
      %v606 = vpop.f32.mrb[0].mxu0
      %v607 = vpop.f32.mrb[0].mxu0
      %v608 = vadd.f32 %v537, %v607
      %v609 = vpop.f32.mrb[0].mxu0
      %610 = vmatprep.mubr.bf16.mxu0 0
      %611 = vmatmul.mubr.bf16.gmra.mrb[0].mxu0 %v550
      %v612 = vpop.f32.mrb[0].mxu0
      %v613 = vadd.f32 %v537, %v612
      %v614 = vpop.f32.mrb[0].mxu0
      %v615 = vpop.f32.mrb[0].mxu0
      %v616 = vadd.f32 %v537, %v615
      %v617 = vpop.f32.mrb[0].mxu0
      %618 = vmatprep.mubr.bf16.mxu0 0
      %619 = vmatmul.mubr.bf16.gmra.mrb[0].mxu0 %v553
      %v620 = vpop.f32.mrb[0].mxu0
      %v621 = vadd.f32 %v537, %v620
      %v622 = vpop.f32.mrb[0].mxu0
      %v623 = vpop.f32.mrb[0].mxu0
      %v624 = vadd.f32 %v537, %v623
      %v625 = vpop.f32.mrb[0].mxu0
      %626 = vmatprep.mubr.bf16.mxu0 0
      %627 = vmatmul.mubr.bf16.gmra.mrb[0].mxu0 %v556
      %v628 = vpop.f32.mrb[0].mxu0
      %v629 = vadd.f32 %v537, %v628
      %v630 = vpop.f32.mrb[0].mxu0
      %v631 = vpop.f32.mrb[0].mxu0
      %v632 = vadd.f32 %v537, %v631
      %v633 = vpop.f32.mrb[0].mxu0
      %634 = vmatprep.mubr.bf16.mxu0 0
      %635 = vmatmul.mubr.bf16.gmra.mrb[0].mxu0 %v559
      %v636 = vpop.f32.mrb[0].mxu0
      %v637 = vadd.f32 %v537, %v636
      %v638 = vpop.f32.mrb[0].mxu0
      %v639 = vpop.f32.mrb[0].mxu0
      %v640 = vadd.f32 %v537, %v639
      %v641 = vpop.f32.mrb[0].mxu0
      %642 = vmatprep.mubr.bf16.mxu0 0
      %643 = vmatmul.mubr.bf16.gmra.mrb[0].mxu0 %v562
      %v644 = vpop.f32.mrb[0].mxu0
      %v645 = vadd.f32 %v537, %v644
      %v646 = vpop.f32.mrb[0].mxu0
      %v647 = vpop.f32.mrb[0].mxu0
      %v648 = vadd.f32 %v537, %v647
      %v649 = vpop.f32.mrb[0].mxu0
      %650 = vmatprep.mubr.bf16.mxu0 0
      %651 = vmatmul.mubr.bf16.gmra.mrb[0].mxu0 %v565
      %v652 = vpop.f32.mrb[0].mxu0
      %v653 = vadd.f32 %v537, %v652
      %v654 = vpop.f32.mrb[0].mxu0
      %v655 = vpop.f32.mrb[0].mxu0
      %v656 = vadd.f32 %v537, %v655
      %v657 = vpop.f32.mrb[0].mxu0
      %658 = vmatprep.mubr.bf16.mxu0 0
      %659 = vmatmul.mubr.bf16.gmra.mrb[0].mxu0 %v568
      %v660 = vpop.f32.mrb[0].mxu0
      %v661 = vadd.f32 %v537, %v660
      %v662 = vpop.f32.mrb[0].mxu0
      %v663 = vpop.f32.mrb[0].mxu0
      %v664 = vadd.f32 %v537, %v663
      %v665 = vpop.f32.mrb[0].mxu0
      %666 = vdwg.mxu0
      %v667 = vmax.f32 %v605, 0.0
      %v668 = vmax.f32 %v608, 0.0
      %v669 = vmax.f32 %v613, 0.0
      %v670 = vmax.f32 %v616, 0.0
      %v671 = vmax.f32 %v621, 0.0
      %v672 = vmax.f32 %v624, 0.0
      %v673 = vmax.f32 %v629, 0.0
      %v674 = vmax.f32 %v632, 0.0
      %v675 = vmax.f32 %v637, 0.0
      %v676 = vmax.f32 %v640, 0.0
      %v677 = vmax.f32 %v645, 0.0
      %v678 = vmax.f32 %v648, 0.0
      %v679 = vmax.f32 %v653, 0.0
      %v680 = vmax.f32 %v656, 0.0
      %v681 = vmax.f32 %v661, 0.0
      %v682 = vmax.f32 %v664, 0.0
      %v683 = vld [vmem:[%s5] sm:$0xf]
      %v684 = vld [vmem:[%s5 + $0x4] sm:$0xf]
      %v685 = vld [vmem:[%s6] sm:$0x1]
      %v686 = vpack.c.bf16 %v668, %v667
      %v687 = vpack.c.bf16 %v670, %v669
      %v688 = vpack.c.bf16 %v672, %v671
      %v689 = vpack.c.bf16 %v674, %v673
      %v690 = vpack.c.bf16 %v676, %v675
      %v691 = vpack.c.bf16 %v678, %v677
      %v692 = vpack.c.bf16 %v680, %v679
      %v693 = vpack.c.bf16 %v682, %v681
      %v695 = vlaneseq
      %v696 = vshrl.u32 %v695, 7
      %v697 = vsub.s32 0, %v696
      %v698 = vrot.slane %v685, %v697
      %v702 = vunpack.c.l.b16 %v683
      %v703 = vunpack.c.l.b16 %v684
      %v704 = vpack.c.b16 %v703, %v702
      %v707 = vsel %vm545, %v686, 0
      %v710 = vsel %vm545, %v687, 0
      %v713 = vsel %vm545, %v688, 0
      %v716 = vsel %vm545, %v689, 0
      %v719 = vsel %vm545, %v690, 0
      %v722 = vsel %vm545, %v691, 0
      %v725 = vsel %vm545, %v692, 0
      %v728 = vsel %vm545, %v693, 0
      %730 = vmatprep.subr.bf16.mxu0 0
      %731 = vmatpush1.bf16.msra.mxu0 %v704
      %732 = vmatprep.subr.bf16.mxu0 0
      %733 = vmatpush1.bf16.msra.mxu0 0
      %734 = vmatprep.subr.bf16.mxu0 0
      %735 = vmatpush1.bf16.msra.mxu0 0
      %736 = vmatprep.subr.bf16.mxu0 0
      %737 = vmatpush1.bf16.msra.mxu0 0
      %738 = vmatprep.subr.bf16.mxu0 0
      %739 = vmatpush1.bf16.msra.mxu0 0
      %740 = vmatprep.subr.bf16.mxu0 0
      %741 = vmatpush1.bf16.msra.mxu0 0
      %742 = vmatprep.subr.bf16.mxu0 0
      %743 = vmatpush1.bf16.msra.mxu0 0
      %744 = vmatprep.subr.bf16.mxu0 0
      %745 = vmatpush1.bf16.msra.mxu0 0
      %746 = vmatprep.subr.bf16.mxu0 0
      %747 = vmatpush1.bf16.msra.mxu0 0
      %748 = vmatprep.subr.bf16.mxu0 0
      %749 = vmatpush1.bf16.msra.mxu0 0
      %750 = vmatprep.subr.bf16.mxu0 0
      %751 = vmatpush1.bf16.msra.mxu0 0
      %752 = vmatprep.subr.bf16.mxu0 0
      %753 = vmatpush1.bf16.msra.mxu0 0
      %754 = vmatprep.subr.bf16.mxu0 0
      %755 = vmatpush1.bf16.msra.mxu0 0
      %756 = vmatprep.subr.bf16.mxu0 0
      %757 = vmatpush1.bf16.msra.mxu0 0
      %758 = vmatprep.subr.bf16.mxu0 0
      %759 = vmatpush1.bf16.msra.mxu0 0
      %760 = vmatprep.subr.bf16.mxu0 0
      %761 = vmatpush1.bf16.msra.mxu0 0
      %762 = vmatprep.mubr.bf16.mxu0 0
      %763 = vmatmul.mubr.bf16.gmra.mrb[0].mxu0 %v707
      %v764 = vpop.f32.mrb[0].mxu0
      %v765 = vadd.f32 %v698, %v764
      %v766 = vpop.f32.mrb[0].mxu0
      %v767 = vpop.f32.mrb[0].mxu0
      %v768 = vadd.f32 %v698, %v767
      %v769 = vpop.f32.mrb[0].mxu0
      %770 = vmatprep.mubr.bf16.mxu0 0
      %771 = vmatmul.mubr.bf16.gmra.mrb[0].mxu0 %v710
      %v772 = vpop.f32.mrb[0].mxu0
      %v773 = vadd.f32 %v698, %v772
      %v774 = vpop.f32.mrb[0].mxu0
      %v775 = vpop.f32.mrb[0].mxu0
      %v776 = vadd.f32 %v698, %v775
      %v777 = vpop.f32.mrb[0].mxu0
      %778 = vmatprep.mubr.bf16.mxu0 0
      %779 = vmatmul.mubr.bf16.gmra.mrb[0].mxu0 %v713
      %v780 = vpop.f32.mrb[0].mxu0
      %v781 = vadd.f32 %v698, %v780
      %v782 = vpop.f32.mrb[0].mxu0
      %v783 = vpop.f32.mrb[0].mxu0
      %v784 = vadd.f32 %v698, %v783
      %v785 = vpop.f32.mrb[0].mxu0
      %786 = vmatprep.mubr.bf16.mxu0 0
      %787 = vmatmul.mubr.bf16.gmra.mrb[0].mxu0 %v716
      %v788 = vpop.f32.mrb[0].mxu0
      %v789 = vadd.f32 %v698, %v788
      %v790 = vpop.f32.mrb[0].mxu0
      %v791 = vpop.f32.mrb[0].mxu0
      %v792 = vadd.f32 %v698, %v791
      %v793 = vpop.f32.mrb[0].mxu0
      %794 = vmatprep.mubr.bf16.mxu0 0
      %795 = vmatmul.mubr.bf16.gmra.mrb[0].mxu0 %v719
      %v796 = vpop.f32.mrb[0].mxu0
      %v797 = vadd.f32 %v698, %v796
      %v798 = vpop.f32.mrb[0].mxu0
      %v799 = vpop.f32.mrb[0].mxu0
      %v800 = vadd.f32 %v698, %v799
      %v801 = vpop.f32.mrb[0].mxu0
      %802 = vmatprep.mubr.bf16.mxu0 0
      %803 = vmatmul.mubr.bf16.gmra.mrb[0].mxu0 %v722
      %v804 = vpop.f32.mrb[0].mxu0
      %v805 = vadd.f32 %v698, %v804
      %v806 = vpop.f32.mrb[0].mxu0
      %v807 = vpop.f32.mrb[0].mxu0
      %v808 = vadd.f32 %v698, %v807
      %v809 = vpop.f32.mrb[0].mxu0
      %810 = vmatprep.mubr.bf16.mxu0 0
      %811 = vmatmul.mubr.bf16.gmra.mrb[0].mxu0 %v725
      %v812 = vpop.f32.mrb[0].mxu0
      %v813 = vadd.f32 %v698, %v812
      %v814 = vpop.f32.mrb[0].mxu0
      %v815 = vpop.f32.mrb[0].mxu0
      %v816 = vadd.f32 %v698, %v815
      %v817 = vpop.f32.mrb[0].mxu0
      %818 = vmatprep.mubr.bf16.mxu0 0
      %819 = vmatmul.mubr.bf16.gmra.mrb[0].mxu0 %v728
      %v820 = vpop.f32.mrb[0].mxu0
      %v821 = vadd.f32 %v698, %v820
      %v822 = vpop.f32.mrb[0].mxu0
      %v823 = vpop.f32.mrb[0].mxu0
      %v824 = vadd.f32 %v698, %v823
      %v825 = vpop.f32.mrb[0].mxu0
      %826 = vdwg.mxu0
      %v827 = vmax.f32 %v765, 0.0
      %v828 = vmax.f32 %v768, 0.0
      %v829 = vmax.f32 %v773, 0.0
      %v830 = vmax.f32 %v776, 0.0
      %v831 = vmax.f32 %v781, 0.0
      %v832 = vmax.f32 %v784, 0.0
      %v833 = vmax.f32 %v789, 0.0
      %v834 = vmax.f32 %v792, 0.0
      %v835 = vmax.f32 %v797, 0.0
      %v836 = vmax.f32 %v800, 0.0
      %v837 = vmax.f32 %v805, 0.0
      %v838 = vmax.f32 %v808, 0.0
      %v839 = vmax.f32 %v813, 0.0
      %v840 = vmax.f32 %v816, 0.0
      %v841 = vmax.f32 %v821, 0.0
      %v842 = vmax.f32 %v824, 0.0
      %vm843 = vcmask 261120
      %v844 = vsel %vm843, %v827, -inf
      %v845 = vrot.slane %v844, 4
      %v846 = vmax.f32 %v844, %v845
      %v847 = vrot.slane %v846, 2
      %v848 = vmax.f32 %v846, %v847
      %v849 = vrot.slane %v848, 1
      %v850 = vmax.f32 %v848, %v849
      %v851 = vsel %vm843, %v828, -inf
      %v852 = vrot.slane %v851, 4
      %v853 = vmax.f32 %v851, %v852
      %v854 = vrot.slane %v853, 2
      %v855 = vmax.f32 %v853, %v854
      %v856 = vrot.slane %v855, 1
      %v857 = vmax.f32 %v855, %v856
      %v858 = vsel %vm843, %v829, -inf
      %v859 = vrot.slane %v858, 4
      %v860 = vmax.f32 %v858, %v859
      %v861 = vrot.slane %v860, 2
      %v862 = vmax.f32 %v860, %v861
      %v863 = vrot.slane %v862, 1
      %v864 = vmax.f32 %v862, %v863
      %v865 = vsel %vm843, %v830, -inf
      %v866 = vrot.slane %v865, 4
      %v867 = vmax.f32 %v865, %v866
      %v868 = vrot.slane %v867, 2
      %v869 = vmax.f32 %v867, %v868
      %v870 = vrot.slane %v869, 1
      %v871 = vmax.f32 %v869, %v870
      %v872 = vsel %vm843, %v831, -inf
      %v873 = vrot.slane %v872, 4
      %v874 = vmax.f32 %v872, %v873
      %v875 = vrot.slane %v874, 2
      %v876 = vmax.f32 %v874, %v875
      %v877 = vrot.slane %v876, 1
      %v878 = vmax.f32 %v876, %v877
      %v879 = vsel %vm843, %v832, -inf
      %v880 = vrot.slane %v879, 4
      %v881 = vmax.f32 %v879, %v880
      %v882 = vrot.slane %v881, 2
      %v883 = vmax.f32 %v881, %v882
      %v884 = vrot.slane %v883, 1
      %v885 = vmax.f32 %v883, %v884
      %v886 = vsel %vm843, %v833, -inf
      %v887 = vrot.slane %v886, 4
      %v888 = vmax.f32 %v886, %v887
      %v889 = vrot.slane %v888, 2
      %v890 = vmax.f32 %v888, %v889
      %v891 = vrot.slane %v890, 1
      %v892 = vmax.f32 %v890, %v891
      %v893 = vsel %vm843, %v834, -inf
      %v894 = vrot.slane %v893, 4
      %v895 = vmax.f32 %v893, %v894
      %v896 = vrot.slane %v895, 2
      %v897 = vmax.f32 %v895, %v896
      %v898 = vrot.slane %v897, 1
      %v899 = vmax.f32 %v897, %v898
      %v900 = vsel %vm843, %v835, -inf
      %v901 = vrot.slane %v900, 4
      %v902 = vmax.f32 %v900, %v901
      %v903 = vrot.slane %v902, 2
      %v904 = vmax.f32 %v902, %v903
      %v905 = vrot.slane %v904, 1
      %v906 = vmax.f32 %v904, %v905
      %v907 = vsel %vm843, %v836, -inf
      %v908 = vrot.slane %v907, 4
      %v909 = vmax.f32 %v907, %v908
      %v910 = vrot.slane %v909, 2
      %v911 = vmax.f32 %v909, %v910
      %v912 = vrot.slane %v911, 1
      %v913 = vmax.f32 %v911, %v912
      %v914 = vsel %vm843, %v837, -inf
      %v915 = vrot.slane %v914, 4
      %v916 = vmax.f32 %v914, %v915
      %v917 = vrot.slane %v916, 2
      %v918 = vmax.f32 %v916, %v917
      %v919 = vrot.slane %v918, 1
      %v920 = vmax.f32 %v918, %v919
      %v921 = vsel %vm843, %v838, -inf
      %v922 = vrot.slane %v921, 4
      %v923 = vmax.f32 %v921, %v922
      %v924 = vrot.slane %v923, 2
      %v925 = vmax.f32 %v923, %v924
      %v926 = vrot.slane %v925, 1
      %v927 = vmax.f32 %v925, %v926
      %v928 = vsel %vm843, %v839, -inf
      %v929 = vrot.slane %v928, 4
      %v930 = vmax.f32 %v928, %v929
      %v931 = vrot.slane %v930, 2
      %v932 = vmax.f32 %v930, %v931
      %v933 = vrot.slane %v932, 1
      %v934 = vmax.f32 %v932, %v933
      %v935 = vsel %vm843, %v840, -inf
      %v936 = vrot.slane %v935, 4
      %v937 = vmax.f32 %v935, %v936
      %v938 = vrot.slane %v937, 2
      %v939 = vmax.f32 %v937, %v938
      %v940 = vrot.slane %v939, 1
      %v941 = vmax.f32 %v939, %v940
      %v942 = vsel %vm843, %v841, -inf
      %v943 = vrot.slane %v942, 4
      %v944 = vmax.f32 %v942, %v943
      %v945 = vrot.slane %v944, 2
      %v946 = vmax.f32 %v944, %v945
      %v947 = vrot.slane %v946, 1
      %v948 = vmax.f32 %v946, %v947
      %v949 = vsel %vm843, %v842, -inf
      %v950 = vrot.slane %v949, 4
      %v951 = vmax.f32 %v949, %v950
      %v952 = vrot.slane %v951, 2
      %v953 = vmax.f32 %v951, %v952
      %v954 = vrot.slane %v953, 1
      %v955 = vmax.f32 %v953, %v954
      %vm972 = vcmask 1041409
      %v973 = vsel %vm972, %v857, %v850
      %vm974 = vcmask 1042434
      %v975 = vsel %vm974, %v864, %v973
      %vm976 = vcmask 1043459
      %v977 = vsel %vm976, %v871, %v975
      %vm978 = vcmask 1044484
      %v979 = vsel %vm978, %v878, %v977
      %vm980 = vcmask 1045509
      %v981 = vsel %vm980, %v885, %v979
      %vm982 = vcmask 1046534
      %v983 = vsel %vm982, %v892, %v981
      %vm984 = vcmask 1047559
      %v985 = vsel %vm984, %v899, %v983
      %v986 = vsel %vm972, %v913, %v906
      %v987 = vsel %vm974, %v920, %v986
      %v988 = vsel %vm976, %v927, %v987
      %v989 = vsel %vm978, %v934, %v988
      %v990 = vsel %vm980, %v941, %v989
      %v991 = vsel %vm982, %v948, %v990
      %v992 = vsel %vm984, %v955, %v991
      %995 = vxpose.xlu0.b32.start [1/16] %v985, 128
      %996 = vxpose.xlu0.b32.cont [2/16] %v992, 128
      %997 = vxpose.xlu0.b32.cont [3/16] 0.0, 128
      %998 = vxpose.xlu0.b32.cont [4/16] 0.0, 128
      %999 = vxpose.xlu0.b32.cont [5/16] 0.0, 128
      %1000 = vxpose.xlu0.b32.cont [6/16] 0.0, 128
      %1001 = vxpose.xlu0.b32.cont [7/16] 0.0, 128
      %1002 = vxpose.xlu0.b32.cont [8/16] 0.0, 128
      %1003 = vxpose.xlu0.b32.cont [9/16] 0.0, 128
      %1004 = vxpose.xlu0.b32.cont [10/16] 0.0, 128
      %1005 = vxpose.xlu0.b32.cont [11/16] 0.0, 128
      %1006 = vxpose.xlu0.b32.cont [12/16] 0.0, 128
      %1007 = vxpose.xlu0.b32.cont [13/16] 0.0, 128
      %1008 = vxpose.xlu0.b32.cont [14/16] 0.0, 128
      %1009 = vxpose.xlu0.b32.cont [15/16] 0.0, 128
      %1010 = vxpose.xlu0.b32.end [16/16] 0.0, 128
      %v1011 = vpop.trf.xlu0
      %v1012 = vpop.trf.xlu0
      %v1013 = vpop.trf.xlu0
      %v1014 = vpop.trf.xlu0
      %v1015 = vpop.trf.xlu0
      %v1016 = vpop.trf.xlu0
      %v1017 = vpop.trf.xlu0
      %v1018 = vpop.trf.xlu0
      %v1019 = vpop.trf.xlu0
      %v1020 = vpop.trf.xlu0
      %v1021 = vpop.trf.xlu0
      %v1022 = vpop.trf.xlu0
      %v1023 = vpop.trf.xlu0
      %v1024 = vpop.trf.xlu0
      %v1025 = vpop.trf.xlu0
      %v1026 = vpop.trf.xlu0
      %1027 = vst.msk [vmem:[%s314] sm:$0xff] %vm545, %v1011
      %1028 = vst.msk [vmem:[%s314 + $0x8] sm:$0xff] %vm545, %v1012
      %1029 = vst.msk [vmem:[%s314 + $0x10] sm:$0xff] %vm545, %v1013
      %1030 = vst.msk [vmem:[%s314 + $0x18] sm:$0xff] %vm545, %v1014
      %p1031 = scmp.lt.s32.totalorder %s22, 1
      %s1032 = scalar_select %p1031, %s22, 1
      %p1033 = scmp.lt.s32.totalorder %s23, 0
      %s1034 = scalar_select %p1033, %s23, 0
      %s1035 = smul.addr %s1032, 4
      %s1036 = sadd.s32 %s1034, %s1035
      %s1037 = smul.addr %s1036, 8
      %s1038 = scalar_lea.vmem %s7, %s1037
      // Predicated region
      $region49: #{keypoint_encoder_forward.3} parent=47 // pred_check
        %p1039 = pneg %p204
      $region50: #{keypoint_encoder_forward.3} parent=47 // pred_check_branch
        %1041 = sbr.rel (%p1039) target = $region52
      $region51: #{keypoint_encoder_forward.3} parent=47 // pred_region
        _
      $region52: #{keypoint_encoder_forward.3} parent=47 // pred_fallthru
        _
    $region48: #{keypoint_encoder_forward.3} parent=5 // pred_fallthru
      _
    %p1042 = scmp.le.s32.totalorder 2, %s13
    // Predicated region
    $region53: #{keypoint_encoder_forward.3} parent=5 // pred_check
      %p1043 = pneg %p1042
    $region54: #{keypoint_encoder_forward.3} parent=5 // pred_check_branch
      %1045 = sbr.rel (%p1043) target = $region56
    $region55: #{keypoint_encoder_forward.3} parent=5 // pred_region
      %s1046 = ssub.s32 %s13, 2
      // Predicated region
      $region57: #{keypoint_encoder_forward.3} parent=55 // pred_check
        %p1047 = pneg %p210
      $region58: #{keypoint_encoder_forward.3} parent=55 // pred_check_branch
        %1049 = sbr.rel (%p1047) target = $region60
      $region59: #{keypoint_encoder_forward.3} parent=55 // pred_region
        %p1050 = scmp.lt.s32.totalorder %s24, 1
        %s1051 = scalar_select %p1050, %s24, 1
        %p1052 = scmp.lt.s32.totalorder %s25, 0
        %s1053 = scalar_select %p1052, %s25, 0
        %s1054 = smul.addr %s1051, 4
        %s1055 = sadd.s32 %s1053, %s1054
        %s1056 = smul.addr %s1055, 8
        %s1057 = scalar_lea.vmem %s7, %s1056
      $region60: #{keypoint_encoder_forward.3} parent=55 // pred_fallthru
        _
    $region56: #{keypoint_encoder_forward.3} parent=5 // pred_fallthru
      _
  $region6: #{keypoint_encoder_forward.3} parent=0 // loop_footer
    %s17 = sadd.s32 1, %s13
  $region7: #{keypoint_encoder_forward.3} parent=0 // loop_footer_branch
    %12 = sbr.rel target = $region3
  $region8: #{keypoint_encoder_forward.3} parent=0 // loop_exit
    _

// kernel: keypoint_encoder_forward.4
$region0: #{keypoint_encoder_forward.4}
  #allocation0 [shape = 'u32[]', space=smem, size = 0x4, offset = 0x4, fixed_abs, tag = 'smem constant byte address 0x4 - core index']
  #allocation1 [shape = 'u32[144,128]{1,0:T(1,128)}', space=vmem, size = 0x12000, scoped, tag = 'internal scratch']
  %s0 = inlined_call_operand.vmem [shape: bf16[2,8,8,40], index: 0, kind: input, shape index: {}]
  %s1 = inlined_call_operand.vmem [shape: bf16[40,32], index: 1, kind: input, shape index: {}]
  %s2 = inlined_call_operand.vmem [shape: f32[1,32], index: 2, kind: input, shape index: {}]
  %s3 = inlined_call_operand.vmem [shape: bf16[32,32], index: 3, kind: input, shape index: {}]
  %s4 = inlined_call_operand.vmem [shape: f32[1,32], index: 4, kind: input, shape index: {}]
  %s5 = inlined_call_operand.vmem [shape: bf16[32,32], index: 5, kind: input, shape index: {}]
  %s6 = inlined_call_operand.vmem [shape: f32[1,32], index: 6, kind: input, shape index: {}]
  %s7 = inlined_call_operand.vmem [shape: f32[2,32,8], index: 7, kind: output, shape index: {}]
  %s8 = sld [smem:[#allocation0]]
  $region61: #{keypoint_encoder_forward.4} parent=0
    _
  %s10 = ssub.s32 1, %s8
  %s11 = scalar_select 0, %s10, %s8
  loop: start=0, step=1, limit=4
  $region2: #{keypoint_encoder_forward.4} parent=0 // loop_pre_header
    _
  $region3: #{keypoint_encoder_forward.4} parent=0 // loop_header
    %s13 = sphi 0, %s17
    %p14 = scmp.ge.s32.totalorder %s13, 4
    %s20 = sphi 0, %s32
    %s21 = sphi 0, %s28
    %s22 = sphi 0, %s20
    %s23 = sphi 0, %s21
    %s24 = sphi 0, %s22
    %s25 = sphi 0, %s23
    %s37 = sphi 0, %s39
    %s40 = sphi 0, %s37
    %s41 = sphi 0, %s40
    %s57 = sphi 0, %s41
    %s61 = sphi 0, %s61
    %s63 = sphi 0, %s61
    %s64 = sphi 0, %s63
    %s78 = sphi 0, %s64
    %s82 = sphi 0, %s82
    %s84 = sphi 0, %s82
    %s85 = sphi 0, %s84
    %s99 = sphi 0, %s85
    %s103 = sphi 0, %s103
    %s105 = sphi 0, %s103
    %s106 = sphi 0, %s105
    %s120 = sphi 0, %s106
    %s124 = sphi 0, %s124
    %s126 = sphi 0, %s124
    %s127 = sphi 0, %s126
    %s141 = sphi 0, %s127
    %s145 = sphi 0, %s145
    %s147 = sphi 0, %s145
    %s148 = sphi 0, %s147
    %s162 = sphi 0, %s148
    %s166 = sphi 0, %s166
    %s168 = sphi 0, %s166
    %s169 = sphi 0, %s168
    %s183 = sphi 0, %s169
    %s191 = sphi 0, %s193
    %s194 = sphi 0, %s191
    %s195 = sphi 0, %s194
    %s211 = sphi 0, %s195
  $region4: #{keypoint_encoder_forward.4} parent=0 // loop_header_branch
    %16 = sbr.rel (%p14) target = $region8
  $region5: #{keypoint_encoder_forward.4} parent=0 // loop_body
    %s18 = ssub.s32 %s13, 1
    %s19 = ssub.s32 %s13, 2
    %s26 = sadd.s32 1, %s21
    %p27 = scmp.ge.s32.totalorder %s26, 1
    %s28 = scalar_select %p27, 0, %s26
    %s29 = sadd.s32 1, %s20
    %s30 = scalar_select %p27, %s29, %s20
    %p31 = scmp.ge.s32.totalorder %s30, 2
    %s32 = scalar_select %p31, 0, %s30
    %s33 = ssub.s32 %s20, %s32
    %s34 = ssub.s32 %s21, %s28
    %s35 = sor.u32 %s33, %s34
    %p36 = scmp.eq.s32.totalorder %s35, 0
    %s38 = sadd.s32 %s37, 1
    %s39 = scalar_select %p36, %s37, %s38
    %p42 = pneg %p36
    %p43 = scmp.eq.s32.totalorder %s13, 1
    %p44 = por %p42, %p43
    %p45 = scmp.ne.s32.totalorder %s37, %s40
    %p46 = scmp.eq.s32.totalorder %s13, 0
    %p47 = por %p45, %p46
    %p48 = scmp.ne.s32.totalorder %s37, %s40
    %p49 = scmp.eq.s32.totalorder %s18, 1
    %p50 = por %p48, %p49
    %p51 = scmp.ne.s32.totalorder %s40, %s41
    %p52 = scmp.eq.s32.totalorder %s18, 0
    %p53 = por %p51, %p52
    %p54 = scmp.ne.s32.totalorder %s40, %s41
    %p55 = scmp.eq.s32.totalorder %s19, 1
    %p56 = por %p54, %p55
    %p58 = scmp.ne.s32.totalorder %s41, %s57
    %p59 = scmp.eq.s32.totalorder %s19, 0
    %p60 = por %p58, %p59
    %s62 = sadd.s32 %s61, 1
    %p65 = scmp.eq.s32.totalorder %s13, 1
    %p66 = scmp.ne.s32.totalorder %s61, %s63
    %p67 = scmp.eq.s32.totalorder %s13, 0
    %p68 = por %p66, %p67
    %p69 = scmp.ne.s32.totalorder %s61, %s63
    %p70 = scmp.eq.s32.totalorder %s18, 1
    %p71 = por %p69, %p70
    %p72 = scmp.ne.s32.totalorder %s63, %s64
    %p73 = scmp.eq.s32.totalorder %s18, 0
    %p74 = por %p72, %p73
    %p75 = scmp.ne.s32.totalorder %s63, %s64
    %p76 = scmp.eq.s32.totalorder %s19, 1
    %p77 = por %p75, %p76
    %p79 = scmp.ne.s32.totalorder %s64, %s78
    %p80 = scmp.eq.s32.totalorder %s19, 0
    %p81 = por %p79, %p80
    %s83 = sadd.s32 %s82, 1
    %p86 = scmp.eq.s32.totalorder %s13, 1
    %p87 = scmp.ne.s32.totalorder %s82, %s84
    %p88 = scmp.eq.s32.totalorder %s13, 0
    %p89 = por %p87, %p88
    %p90 = scmp.ne.s32.totalorder %s82, %s84
    %p91 = scmp.eq.s32.totalorder %s18, 1
    %p92 = por %p90, %p91
    %p93 = scmp.ne.s32.totalorder %s84, %s85
    %p94 = scmp.eq.s32.totalorder %s18, 0
    %p95 = por %p93, %p94
    %p96 = scmp.ne.s32.totalorder %s84, %s85
    %p97 = scmp.eq.s32.totalorder %s19, 1
    %p98 = por %p96, %p97
    %p100 = scmp.ne.s32.totalorder %s85, %s99
    %p101 = scmp.eq.s32.totalorder %s19, 0
    %p102 = por %p100, %p101
    %s104 = sadd.s32 %s103, 1
    %p107 = scmp.eq.s32.totalorder %s13, 1
    %p108 = scmp.ne.s32.totalorder %s103, %s105
    %p109 = scmp.eq.s32.totalorder %s13, 0
    %p110 = por %p108, %p109
    %p111 = scmp.ne.s32.totalorder %s103, %s105
    %p112 = scmp.eq.s32.totalorder %s18, 1
    %p113 = por %p111, %p112
    %p114 = scmp.ne.s32.totalorder %s105, %s106
    %p115 = scmp.eq.s32.totalorder %s18, 0
    %p116 = por %p114, %p115
    %p117 = scmp.ne.s32.totalorder %s105, %s106
    %p118 = scmp.eq.s32.totalorder %s19, 1
    %p119 = por %p117, %p118
    %p121 = scmp.ne.s32.totalorder %s106, %s120
    %p122 = scmp.eq.s32.totalorder %s19, 0
    %p123 = por %p121, %p122
    %s125 = sadd.s32 %s124, 1
    %p128 = scmp.eq.s32.totalorder %s13, 1
    %p129 = scmp.ne.s32.totalorder %s124, %s126
    %p130 = scmp.eq.s32.totalorder %s13, 0
    %p131 = por %p129, %p130
    %p132 = scmp.ne.s32.totalorder %s124, %s126
    %p133 = scmp.eq.s32.totalorder %s18, 1
    %p134 = por %p132, %p133
    %p135 = scmp.ne.s32.totalorder %s126, %s127
    %p136 = scmp.eq.s32.totalorder %s18, 0
    %p137 = por %p135, %p136
    %p138 = scmp.ne.s32.totalorder %s126, %s127
    %p139 = scmp.eq.s32.totalorder %s19, 1
    %p140 = por %p138, %p139
    %p142 = scmp.ne.s32.totalorder %s127, %s141
    %p143 = scmp.eq.s32.totalorder %s19, 0
    %p144 = por %p142, %p143
    %s146 = sadd.s32 %s145, 1
    %p149 = scmp.eq.s32.totalorder %s13, 1
    %p150 = scmp.ne.s32.totalorder %s145, %s147
    %p151 = scmp.eq.s32.totalorder %s13, 0
    %p152 = por %p150, %p151
    %p153 = scmp.ne.s32.totalorder %s145, %s147
    %p154 = scmp.eq.s32.totalorder %s18, 1
    %p155 = por %p153, %p154
    %p156 = scmp.ne.s32.totalorder %s147, %s148
    %p157 = scmp.eq.s32.totalorder %s18, 0
    %p158 = por %p156, %p157
    %p159 = scmp.ne.s32.totalorder %s147, %s148
    %p160 = scmp.eq.s32.totalorder %s19, 1
    %p161 = por %p159, %p160
    %p163 = scmp.ne.s32.totalorder %s148, %s162
    %p164 = scmp.eq.s32.totalorder %s19, 0
    %p165 = por %p163, %p164
    %s167 = sadd.s32 %s166, 1
    %p170 = scmp.eq.s32.totalorder %s13, 1
    %p171 = scmp.ne.s32.totalorder %s166, %s168
    %p172 = scmp.eq.s32.totalorder %s13, 0
    %p173 = por %p171, %p172
    %p174 = scmp.ne.s32.totalorder %s166, %s168
    %p175 = scmp.eq.s32.totalorder %s18, 1
    %p176 = por %p174, %p175
    %p177 = scmp.ne.s32.totalorder %s168, %s169
    %p178 = scmp.eq.s32.totalorder %s18, 0
    %p179 = por %p177, %p178
    %p180 = scmp.ne.s32.totalorder %s168, %s169
    %p181 = scmp.eq.s32.totalorder %s19, 1
    %p182 = por %p180, %p181
    %p184 = scmp.ne.s32.totalorder %s169, %s183
    %p185 = scmp.eq.s32.totalorder %s19, 0
    %p186 = por %p184, %p185
    %s187 = ssub.s32 %s20, %s32
    %s188 = ssub.s32 %s21, %s28
    %s189 = sor.u32 %s187, %s188
    %p190 = scmp.eq.s32.totalorder %s189, 0
    %s192 = sadd.s32 %s191, 1
    %s193 = scalar_select %p190, %s191, %s192
    %p196 = pneg %p190
    %p197 = scmp.eq.s32.totalorder %s13, 1
    %p198 = por %p196, %p197
    %p199 = scmp.ne.s32.totalorder %s191, %s194
    %p200 = scmp.eq.s32.totalorder %s13, 0
    %p201 = por %p199, %p200
    %p202 = scmp.ne.s32.totalorder %s191, %s194
    %p203 = scmp.eq.s32.totalorder %s18, 1
    %p204 = por %p202, %p203
    %p205 = scmp.ne.s32.totalorder %s194, %s195
    %p206 = scmp.eq.s32.totalorder %s18, 0
    %p207 = por %p205, %p206
    %p208 = scmp.ne.s32.totalorder %s194, %s195
    %p209 = scmp.eq.s32.totalorder %s19, 1
    %p210 = por %p208, %p209
    %p212 = scmp.ne.s32.totalorder %s195, %s211
    %p213 = scmp.eq.s32.totalorder %s19, 0
    %p214 = por %p212, %p213
    %p215 = scmp.le.s32.totalorder 1, %s13
    %p216 = scmp.lt.s32.totalorder %s13, 3
    %p217 = pnand %p215, %p216
    %p218 = pneg %p217
    // Predicated region
    $region9: #{keypoint_encoder_forward.4} parent=5 // pred_check
      _
    $region10: #{keypoint_encoder_forward.4} parent=5 // pred_check_branch
      %220 = sbr.rel (%p217) target = $region12
    $region11: #{keypoint_encoder_forward.4} parent=5 // pred_region
      %s221 = ssub.s32 %s13, 1
      // Predicated region
      $region13: #{keypoint_encoder_forward.4} parent=11 // pred_check
        %p222 = pneg %p74
      $region14: #{keypoint_encoder_forward.4} parent=11 // pred_check_branch
        %224 = sbr.rel (%p222) target = $region16
      $region15: #{keypoint_encoder_forward.4} parent=11 // pred_region
        _
      $region16: #{keypoint_encoder_forward.4} parent=11 // pred_fallthru
        _
      // Predicated region
      $region17: #{keypoint_encoder_forward.4} parent=11 // pred_check
        %p225 = pneg %p95
      $region18: #{keypoint_encoder_forward.4} parent=11 // pred_check_branch
        %227 = sbr.rel (%p225) target = $region20
      $region19: #{keypoint_encoder_forward.4} parent=11 // pred_region
        _
      $region20: #{keypoint_encoder_forward.4} parent=11 // pred_fallthru
        _
      // Predicated region
      $region21: #{keypoint_encoder_forward.4} parent=11 // pred_check
        %p228 = pneg %p116
      $region22: #{keypoint_encoder_forward.4} parent=11 // pred_check_branch
        %230 = sbr.rel (%p228) target = $region24
      $region23: #{keypoint_encoder_forward.4} parent=11 // pred_region
        _
      $region24: #{keypoint_encoder_forward.4} parent=11 // pred_fallthru
        _
      // Predicated region
      $region25: #{keypoint_encoder_forward.4} parent=11 // pred_check
        %p231 = pneg %p137
      $region26: #{keypoint_encoder_forward.4} parent=11 // pred_check_branch
        %233 = sbr.rel (%p231) target = $region28
      $region27: #{keypoint_encoder_forward.4} parent=11 // pred_region
        _
      $region28: #{keypoint_encoder_forward.4} parent=11 // pred_fallthru
        _
      // Predicated region
      $region29: #{keypoint_encoder_forward.4} parent=11 // pred_check
        %p234 = pneg %p158
      $region30: #{keypoint_encoder_forward.4} parent=11 // pred_check_branch
        %236 = sbr.rel (%p234) target = $region32
      $region31: #{keypoint_encoder_forward.4} parent=11 // pred_region
        _
      $region32: #{keypoint_encoder_forward.4} parent=11 // pred_fallthru
        _
      // Predicated region
      $region33: #{keypoint_encoder_forward.4} parent=11 // pred_check
        %p237 = pneg %p179
      $region34: #{keypoint_encoder_forward.4} parent=11 // pred_check_branch
        %239 = sbr.rel (%p237) target = $region36
      $region35: #{keypoint_encoder_forward.4} parent=11 // pred_region
        _
      $region36: #{keypoint_encoder_forward.4} parent=11 // pred_fallthru
        _
    $region12: #{keypoint_encoder_forward.4} parent=5 // pred_fallthru
      _
    %p240 = scmp.lt.s32.totalorder %s13, 2
    // Predicated region
    $region37: #{keypoint_encoder_forward.4} parent=5 // pred_check
      %p241 = pneg %p240
    $region38: #{keypoint_encoder_forward.4} parent=5 // pred_check_branch
      %243 = sbr.rel (%p241) target = $region40
    $region39: #{keypoint_encoder_forward.4} parent=5 // pred_region
      // Predicated region
      $region41: #{keypoint_encoder_forward.4} parent=39 // pred_check
        %p244 = pneg %p47
      $region42: #{keypoint_encoder_forward.4} parent=39 // pred_check_branch
        %246 = sbr.rel (%p244) target = $region44
      $region43: #{keypoint_encoder_forward.4} parent=39 // pred_region
        %s247 = smul.u32 8, %s21
        %p248 = scmp.lt.s32.totalorder %s20, 1
        %s249 = scalar_select %p248, %s20, 1
        %p250 = scmp.lt.s32.totalorder %s247, 7
        %s251 = scalar_select %p250, %s247, 7
        %s252 = smul.addr %s249, 8
        %s253 = sadd.s32 %s251, %s252
        %s254 = smul.addr %s253, 4
        %s255 = scalar_lea.vmem %s0, %s254
        %s256 = smul.u32 8, %s21
      $region44: #{keypoint_encoder_forward.4} parent=39 // pred_fallthru
        _
    $region40: #{keypoint_encoder_forward.4} parent=5 // pred_fallthru
      _
    %p257 = scmp.le.s32.totalorder 1, %s13
    %p258 = scmp.lt.s32.totalorder %s13, 3
    %p259 = pnand %p257, %p258
    %p260 = pneg %p259
    // Predicated region
    $region45: #{keypoint_encoder_forward.4} parent=5 // pred_check
      _
    $region46: #{keypoint_encoder_forward.4} parent=5 // pred_check_branch
      %262 = sbr.rel (%p259) target = $region48
    $region47: #{keypoint_encoder_forward.4} parent=5 // pred_region
      %s263 = ssub.s32 %s13, 1
      %s264 = smul.u32 8, %s23
      %p265 = scmp.lt.s32.totalorder %s22, 1
      %s266 = scalar_select %p265, %s22, 1
      %p267 = scmp.lt.s32.totalorder %s264, 7
      %s268 = scalar_select %p267, %s264, 7
      %s269 = smul.addr %s266, 8
      %s270 = sadd.s32 %s268, %s269
      %s271 = smul.addr %s270, 4
      %s272 = scalar_lea.vmem %s0, %s271
      %p273 = pneg %p53
      %p274 = pneg %p50
      %p275 = pneg %p74
      %p276 = pneg %p71
      %p277 = pneg %p95
      %p278 = pneg %p92
      %p279 = pneg %p116
      %p280 = pneg %p113
      %p281 = pneg %p137
      %p282 = pneg %p134
      %p283 = pneg %p158
      %p284 = pneg %p155
      %p285 = pneg %p179
      %p286 = pneg %p176
      %p287 = pneg %p207
      %p288 = pneg %p204
      %p289 = scmp.lt.s32.totalorder %s22, 1
      %s290 = scalar_select %p289, %s22, 1
      %p291 = scmp.lt.s32.totalorder %s23, 0
      %s292 = scalar_select %p291, %s23, 0
      %s293 = smul.addr %s290, 4
      %s294 = sadd.s32 %s292, %s293
      %s295 = smul.addr %s294, 8
      %s296 = scalar_lea.vmem %s7, %s295
      %s297 = smul.u32 8, %s23
      %p298 = scmp.lt.s32.totalorder %s22, 1
      %s299 = scalar_select %p298, %s22, 1
      %p300 = scmp.lt.s32.totalorder %s297, 7
      %s301 = scalar_select %p300, %s297, 7
      %s302 = smul.addr %s299, 8
      %s303 = sadd.s32 %s301, %s302
      %s304 = smul.addr %s303, 4
      %s305 = scalar_lea.vmem %s0, %s304
      %s306 = smul.u32 8, %s23
      %p307 = scmp.lt.s32.totalorder %s22, 1
      %s308 = scalar_select %p307, %s22, 1
      %p309 = scmp.lt.s32.totalorder %s23, 0
      %s310 = scalar_select %p309, %s23, 0
      %s311 = smul.addr %s308, 4
      %s312 = sadd.s32 %s310, %s311
      %s313 = smul.addr %s312, 8
      %s314 = scalar_lea.vmem %s7, %s313
      %v316 = vld [vmem:[%s305] sm:$0xf]
      %v317 = vld [vmem:[%s305 + $0x4] sm:$0xf]
      %v318 = vld [vmem:[%s305 + $0x8] sm:$0xf]
      %v319 = vld [vmem:[%s305 + $0xc] sm:$0xf]
      %v320 = vld [vmem:[%s305 + $0x10] sm:$0xf]
      %v321 = vld [vmem:[%s305 + $0x14] sm:$0xf]
      %v322 = vld [vmem:[%s305 + $0x18] sm:$0xf]
      %v323 = vld [vmem:[%s305 + $0x1c] sm:$0xf]
      %v324 = vld [vmem:[%s1] sm:$0xf]
      %v325 = vld [vmem:[%s1 + $0x4] sm:$0xf]
      %v326 = vld [vmem:[%s1 + $0x8] sm:$0xf]
      %v327 = vld [vmem:[%s1 + $0xc] sm:$0xf]
      %v328 = vld [vmem:[%s1 + $0x10] sm:$0xf]
      %v329 = vld [vmem:[%s2] sm:$0x1]
      %v331 = vlaneseq
      %v332 = vshrl.u32 %v331, 7
      %v333 = vsub.s32 0, %v332
      %v334 = vrot.slane %v329, %v333
      %v344 = vunpack.c.l.b16 %v316
      %v345 = vunpack.c.l.b16 %v317
      %v346 = vunpack.c.l.b16 %v318
      %v347 = vunpack.c.l.b16 %v319
      %v348 = vunpack.c.l.b16 %v320
      %v349 = vunpack.c.l.b16 %v321
      %v350 = vunpack.c.l.b16 %v322
      %v351 = vunpack.c.l.b16 %v323
      %v352 = vpack.c.b16 %v345, %v344
      %v353 = vpack.c.b16 %v347, %v346
      %v354 = vpack.c.b16 %v349, %v348
      %v355 = vpack.c.b16 %v351, %v350
      %v361 = vunpack.c.l.b16 %v324
      %v362 = vunpack.c.l.b16 %v325
      %v363 = vunpack.c.l.b16 %v326
      %v364 = vunpack.c.l.b16 %v327
      %v365 = vunpack.c.l.b16 %v328
      %v366 = vpack.c.b16 %v362, %v361
      %v367 = vpack.c.b16 %v364, %v363
      %v368 = vpack.c.b16 %v365, %v365
      %vm371 = vcmask 326656
      %v373 = vsel %vm371, %v352, 0
      %v376 = vsel %vm371, %v353, 0
      %v379 = vsel %vm371, %v354, 0
      %v382 = vsel %vm371, %v355, 0
      %vm384 = vcmask 1043456
      %v386 = vsel %vm384, %v368, 0
      %388 = vmatprep.subr.bf16.mxu0 0
      %389 = vmatpush1.bf16.msra.mxu0 %v366
      %390 = vmatprep.subr.bf16.mxu0 0
      %391 = vmatpush1.bf16.msra.mxu0 %v367
      %392 = vmatprep.subr.bf16.mxu0 0
      %393 = vmatpush1.bf16.msra.mxu0 %v386
      %394 = vmatprep.subr.bf16.mxu0 0
      %395 = vmatpush1.bf16.msra.mxu0 0
      %396 = vmatprep.subr.bf16.mxu0 0
      %397 = vmatpush1.bf16.msra.mxu0 0
      %398 = vmatprep.subr.bf16.mxu0 0
      %399 = vmatpush1.bf16.msra.mxu0 0
      %400 = vmatprep.subr.bf16.mxu0 0
      %401 = vmatpush1.bf16.msra.mxu0 0
      %402 = vmatprep.subr.bf16.mxu0 0
      %403 = vmatpush1.bf16.msra.mxu0 0
      %404 = vmatprep.subr.bf16.mxu0 0
      %405 = vmatpush1.bf16.msra.mxu0 0
      %406 = vmatprep.subr.bf16.mxu0 0
      %407 = vmatpush1.bf16.msra.mxu0 0
      %408 = vmatprep.subr.bf16.mxu0 0
      %409 = vmatpush1.bf16.msra.mxu0 0
      %410 = vmatprep.subr.bf16.mxu0 0
      %411 = vmatpush1.bf16.msra.mxu0 0
      %412 = vmatprep.subr.bf16.mxu0 0
      %413 = vmatpush1.bf16.msra.mxu0 0
      %414 = vmatprep.subr.bf16.mxu0 0
      %415 = vmatpush1.bf16.msra.mxu0 0
      %416 = vmatprep.subr.bf16.mxu0 0
      %417 = vmatpush1.bf16.msra.mxu0 0
      %418 = vmatprep.subr.bf16.mxu0 0
      %419 = vmatpush1.bf16.msra.mxu0 0
      %420 = vmatprep.mubr.bf16.mxu0 0
      %421 = vmatmul.mubr.bf16.gmra.mrb[0].mxu0 %v373
      %v422 = vpop.f32.mrb[0].mxu0
      %v423 = vadd.f32 %v334, %v422
      %v424 = vpop.f32.mrb[0].mxu0
      %v425 = vpop.f32.mrb[0].mxu0
      %v426 = vadd.f32 %v334, %v425
      %v427 = vpop.f32.mrb[0].mxu0
      %428 = vmatprep.mubr.bf16.mxu0 0
      %429 = vmatmul.mubr.bf16.gmra.mrb[0].mxu0 %v376
      %v430 = vpop.f32.mrb[0].mxu0
      %v431 = vadd.f32 %v334, %v430
      %v432 = vpop.f32.mrb[0].mxu0
      %v433 = vpop.f32.mrb[0].mxu0
      %v434 = vadd.f32 %v334, %v433
      %v435 = vpop.f32.mrb[0].mxu0
      %436 = vmatprep.mubr.bf16.mxu0 0
      %437 = vmatmul.mubr.bf16.gmra.mrb[0].mxu0 %v379
      %v438 = vpop.f32.mrb[0].mxu0
      %v439 = vadd.f32 %v334, %v438
      %v440 = vpop.f32.mrb[0].mxu0
      %v441 = vpop.f32.mrb[0].mxu0
      %v442 = vadd.f32 %v334, %v441
      %v443 = vpop.f32.mrb[0].mxu0
      %444 = vmatprep.mubr.bf16.mxu0 0
      %445 = vmatmul.mubr.bf16.gmra.mrb[0].mxu0 %v382
      %v446 = vpop.f32.mrb[0].mxu0
      %v447 = vadd.f32 %v334, %v446
      %v448 = vpop.f32.mrb[0].mxu0
      %v449 = vpop.f32.mrb[0].mxu0
      %v450 = vadd.f32 %v334, %v449
      %v451 = vpop.f32.mrb[0].mxu0
      %452 = vdwg.mxu0
      %v453 = vmax.f32 %v423, 0.0
      %v454 = vmax.f32 %v426, 0.0
      %v455 = vmax.f32 %v431, 0.0
      %v456 = vmax.f32 %v434, 0.0
      %v457 = vmax.f32 %v439, 0.0
      %v458 = vmax.f32 %v442, 0.0
      %v459 = vmax.f32 %v447, 0.0
      %v460 = vmax.f32 %v450, 0.0
      %v461 = vld [vmem:[%s3] sm:$0xf]
      %v462 = vld [vmem:[%s3 + $0x4] sm:$0xf]
      %v463 = vld [vmem:[%s3 + $0x8] sm:$0xf]
      %v464 = vld [vmem:[%s3 + $0xc] sm:$0xf]
      %v465 = vld [vmem:[%s4] sm:$0x1]
      %v466 = vpack.c.bf16 %v454, %v453
      %v467 = vpack.c.bf16 %v456, %v455
      %v468 = vpack.c.bf16 %v458, %v457
      %v469 = vpack.c.bf16 %v460, %v459
      %v471 = vlaneseq
      %v472 = vshrl.u32 %v471, 7
      %v473 = vsub.s32 0, %v472
      %v474 = vrot.slane %v465, %v473
      %v480 = vunpack.c.l.b16 %v461
      %v481 = vunpack.c.l.b16 %v462
      %v482 = vunpack.c.l.b16 %v463
      %v483 = vunpack.c.l.b16 %v464
      %v484 = vpack.c.b16 %v481, %v480
      %v485 = vpack.c.b16 %v483, %v482
      %vm488 = vcmask 261120
      %v490 = vsel %vm488, %v466, 0
      %v493 = vsel %vm488, %v467, 0
      %v496 = vsel %vm488, %v468, 0
      %v499 = vsel %vm488, %v469, 0
      %501 = vmatprep.subr.bf16.mxu0 0
      %502 = vmatpush1.bf16.msra.mxu0 %v484
      %503 = vmatprep.subr.bf16.mxu0 0
      %504 = vmatpush1.bf16.msra.mxu0 %v485
      %505 = vmatprep.subr.bf16.mxu0 0
      %506 = vmatpush1.bf16.msra.mxu0 0
      %507 = vmatprep.subr.bf16.mxu0 0
      %508 = vmatpush1.bf16.msra.mxu0 0
      %509 = vmatprep.subr.bf16.mxu0 0
      %510 = vmatpush1.bf16.msra.mxu0 0
      %511 = vmatprep.subr.bf16.mxu0 0
      %512 = vmatpush1.bf16.msra.mxu0 0
      %513 = vmatprep.subr.bf16.mxu0 0
      %514 = vmatpush1.bf16.msra.mxu0 0
      %515 = vmatprep.subr.bf16.mxu0 0
      %516 = vmatpush1.bf16.msra.mxu0 0
      %517 = vmatprep.subr.bf16.mxu0 0
      %518 = vmatpush1.bf16.msra.mxu0 0
      %519 = vmatprep.subr.bf16.mxu0 0
      %520 = vmatpush1.bf16.msra.mxu0 0
      %521 = vmatprep.subr.bf16.mxu0 0
      %522 = vmatpush1.bf16.msra.mxu0 0
      %523 = vmatprep.subr.bf16.mxu0 0
      %524 = vmatpush1.bf16.msra.mxu0 0
      %525 = vmatprep.subr.bf16.mxu0 0
      %526 = vmatpush1.bf16.msra.mxu0 0
      %527 = vmatprep.subr.bf16.mxu0 0
      %528 = vmatpush1.bf16.msra.mxu0 0
      %529 = vmatprep.subr.bf16.mxu0 0
      %530 = vmatpush1.bf16.msra.mxu0 0
      %531 = vmatprep.subr.bf16.mxu0 0
      %532 = vmatpush1.bf16.msra.mxu0 0
      %533 = vmatprep.mubr.bf16.mxu0 0
      %534 = vmatmul.mubr.bf16.gmra.mrb[0].mxu0 %v490
      %v535 = vpop.f32.mrb[0].mxu0
      %v536 = vadd.f32 %v474, %v535
      %v537 = vpop.f32.mrb[0].mxu0
      %v538 = vpop.f32.mrb[0].mxu0
      %v539 = vadd.f32 %v474, %v538
      %v540 = vpop.f32.mrb[0].mxu0
      %541 = vmatprep.mubr.bf16.mxu0 0
      %542 = vmatmul.mubr.bf16.gmra.mrb[0].mxu0 %v493
      %v543 = vpop.f32.mrb[0].mxu0
      %v544 = vadd.f32 %v474, %v543
      %v545 = vpop.f32.mrb[0].mxu0
      %v546 = vpop.f32.mrb[0].mxu0
      %v547 = vadd.f32 %v474, %v546
      %v548 = vpop.f32.mrb[0].mxu0
      %549 = vmatprep.mubr.bf16.mxu0 0
      %550 = vmatmul.mubr.bf16.gmra.mrb[0].mxu0 %v496
      %v551 = vpop.f32.mrb[0].mxu0
      %v552 = vadd.f32 %v474, %v551
      %v553 = vpop.f32.mrb[0].mxu0
      %v554 = vpop.f32.mrb[0].mxu0
      %v555 = vadd.f32 %v474, %v554
      %v556 = vpop.f32.mrb[0].mxu0
      %557 = vmatprep.mubr.bf16.mxu0 0
      %558 = vmatmul.mubr.bf16.gmra.mrb[0].mxu0 %v499
      %v559 = vpop.f32.mrb[0].mxu0
      %v560 = vadd.f32 %v474, %v559
      %v561 = vpop.f32.mrb[0].mxu0
      %v562 = vpop.f32.mrb[0].mxu0
      %v563 = vadd.f32 %v474, %v562
      %v564 = vpop.f32.mrb[0].mxu0
      %565 = vdwg.mxu0
      %v566 = vmax.f32 %v536, 0.0
      %v567 = vmax.f32 %v539, 0.0
      %v568 = vmax.f32 %v544, 0.0
      %v569 = vmax.f32 %v547, 0.0
      %v570 = vmax.f32 %v552, 0.0
      %v571 = vmax.f32 %v555, 0.0
      %v572 = vmax.f32 %v560, 0.0
      %v573 = vmax.f32 %v563, 0.0
      %v574 = vld [vmem:[%s5] sm:$0xf]
      %v575 = vld [vmem:[%s5 + $0x4] sm:$0xf]
      %v576 = vld [vmem:[%s5 + $0x8] sm:$0xf]
      %v577 = vld [vmem:[%s5 + $0xc] sm:$0xf]
      %v578 = vld [vmem:[%s6] sm:$0x1]
      %v579 = vpack.c.bf16 %v567, %v566
      %v580 = vpack.c.bf16 %v569, %v568
      %v581 = vpack.c.bf16 %v571, %v570
      %v582 = vpack.c.bf16 %v573, %v572
      %v584 = vlaneseq
      %v585 = vshrl.u32 %v584, 7
      %v586 = vsub.s32 0, %v585
      %v587 = vrot.slane %v578, %v586
      %v593 = vunpack.c.l.b16 %v574
      %v594 = vunpack.c.l.b16 %v575
      %v595 = vunpack.c.l.b16 %v576
      %v596 = vunpack.c.l.b16 %v577
      %v597 = vpack.c.b16 %v594, %v593
      %v598 = vpack.c.b16 %v596, %v595
      %v602 = vsel %vm488, %v579, 0
      %v605 = vsel %vm488, %v580, 0
      %v608 = vsel %vm488, %v581, 0
      %v611 = vsel %vm488, %v582, 0
      %613 = vmatprep.subr.bf16.mxu0 0
      %614 = vmatpush1.bf16.msra.mxu0 %v597
      %615 = vmatprep.subr.bf16.mxu0 0
      %616 = vmatpush1.bf16.msra.mxu0 %v598
      %617 = vmatprep.subr.bf16.mxu0 0
      %618 = vmatpush1.bf16.msra.mxu0 0
      %619 = vmatprep.subr.bf16.mxu0 0
      %620 = vmatpush1.bf16.msra.mxu0 0
      %621 = vmatprep.subr.bf16.mxu0 0
      %622 = vmatpush1.bf16.msra.mxu0 0
      %623 = vmatprep.subr.bf16.mxu0 0
      %624 = vmatpush1.bf16.msra.mxu0 0
      %625 = vmatprep.subr.bf16.mxu0 0
      %626 = vmatpush1.bf16.msra.mxu0 0
      %627 = vmatprep.subr.bf16.mxu0 0
      %628 = vmatpush1.bf16.msra.mxu0 0
      %629 = vmatprep.subr.bf16.mxu0 0
      %630 = vmatpush1.bf16.msra.mxu0 0
      %631 = vmatprep.subr.bf16.mxu0 0
      %632 = vmatpush1.bf16.msra.mxu0 0
      %633 = vmatprep.subr.bf16.mxu0 0
      %634 = vmatpush1.bf16.msra.mxu0 0
      %635 = vmatprep.subr.bf16.mxu0 0
      %636 = vmatpush1.bf16.msra.mxu0 0
      %637 = vmatprep.subr.bf16.mxu0 0
      %638 = vmatpush1.bf16.msra.mxu0 0
      %639 = vmatprep.subr.bf16.mxu0 0
      %640 = vmatpush1.bf16.msra.mxu0 0
      %641 = vmatprep.subr.bf16.mxu0 0
      %642 = vmatpush1.bf16.msra.mxu0 0
      %643 = vmatprep.subr.bf16.mxu0 0
      %644 = vmatpush1.bf16.msra.mxu0 0
      %645 = vmatprep.mubr.bf16.mxu0 0
      %646 = vmatmul.mubr.bf16.gmra.mrb[0].mxu0 %v602
      %v647 = vpop.f32.mrb[0].mxu0
      %v648 = vadd.f32 %v587, %v647
      %v649 = vpop.f32.mrb[0].mxu0
      %v650 = vpop.f32.mrb[0].mxu0
      %v651 = vadd.f32 %v587, %v650
      %v652 = vpop.f32.mrb[0].mxu0
      %653 = vmatprep.mubr.bf16.mxu0 0
      %654 = vmatmul.mubr.bf16.gmra.mrb[0].mxu0 %v605
      %v655 = vpop.f32.mrb[0].mxu0
      %v656 = vadd.f32 %v587, %v655
      %v657 = vpop.f32.mrb[0].mxu0
      %v658 = vpop.f32.mrb[0].mxu0
      %v659 = vadd.f32 %v587, %v658
      %v660 = vpop.f32.mrb[0].mxu0
      %661 = vmatprep.mubr.bf16.mxu0 0
      %662 = vmatmul.mubr.bf16.gmra.mrb[0].mxu0 %v608
      %v663 = vpop.f32.mrb[0].mxu0
      %v664 = vadd.f32 %v587, %v663
      %v665 = vpop.f32.mrb[0].mxu0
      %v666 = vpop.f32.mrb[0].mxu0
      %v667 = vadd.f32 %v587, %v666
      %v668 = vpop.f32.mrb[0].mxu0
      %669 = vmatprep.mubr.bf16.mxu0 0
      %670 = vmatmul.mubr.bf16.gmra.mrb[0].mxu0 %v611
      %v671 = vpop.f32.mrb[0].mxu0
      %v672 = vadd.f32 %v587, %v671
      %v673 = vpop.f32.mrb[0].mxu0
      %v674 = vpop.f32.mrb[0].mxu0
      %v675 = vadd.f32 %v587, %v674
      %v676 = vpop.f32.mrb[0].mxu0
      %677 = vdwg.mxu0
      %v678 = vmax.f32 %v648, 0.0
      %v679 = vmax.f32 %v651, 0.0
      %v680 = vmax.f32 %v656, 0.0
      %v681 = vmax.f32 %v659, 0.0
      %v682 = vmax.f32 %v664, 0.0
      %v683 = vmax.f32 %v667, 0.0
      %v684 = vmax.f32 %v672, 0.0
      %v685 = vmax.f32 %v675, 0.0
      %v686 = vsel %vm488, %v678, -inf
      %v687 = vrot.slane %v686, 4
      %v688 = vmax.f32 %v686, %v687
      %v689 = vrot.slane %v688, 2
      %v690 = vmax.f32 %v688, %v689
      %v691 = vrot.slane %v690, 1
      %v692 = vmax.f32 %v690, %v691
      %v693 = vsel %vm488, %v679, -inf
      %v694 = vrot.slane %v693, 4
      %v695 = vmax.f32 %v693, %v694
      %v696 = vrot.slane %v695, 2
      %v697 = vmax.f32 %v695, %v696
      %v698 = vrot.slane %v697, 1
      %v699 = vmax.f32 %v697, %v698
      %v700 = vsel %vm488, %v680, -inf
      %v701 = vrot.slane %v700, 4
      %v702 = vmax.f32 %v700, %v701
      %v703 = vrot.slane %v702, 2
      %v704 = vmax.f32 %v702, %v703
      %v705 = vrot.slane %v704, 1
      %v706 = vmax.f32 %v704, %v705
      %v707 = vsel %vm488, %v681, -inf
      %v708 = vrot.slane %v707, 4
      %v709 = vmax.f32 %v707, %v708
      %v710 = vrot.slane %v709, 2
      %v711 = vmax.f32 %v709, %v710
      %v712 = vrot.slane %v711, 1
      %v713 = vmax.f32 %v711, %v712
      %v714 = vsel %vm488, %v682, -inf
      %v715 = vrot.slane %v714, 4
      %v716 = vmax.f32 %v714, %v715
      %v717 = vrot.slane %v716, 2
      %v718 = vmax.f32 %v716, %v717
      %v719 = vrot.slane %v718, 1
      %v720 = vmax.f32 %v718, %v719
      %v721 = vsel %vm488, %v683, -inf
      %v722 = vrot.slane %v721, 4
      %v723 = vmax.f32 %v721, %v722
      %v724 = vrot.slane %v723, 2
      %v725 = vmax.f32 %v723, %v724
      %v726 = vrot.slane %v725, 1
      %v727 = vmax.f32 %v725, %v726
      %v728 = vsel %vm488, %v684, -inf
      %v729 = vrot.slane %v728, 4
      %v730 = vmax.f32 %v728, %v729
      %v731 = vrot.slane %v730, 2
      %v732 = vmax.f32 %v730, %v731
      %v733 = vrot.slane %v732, 1
      %v734 = vmax.f32 %v732, %v733
      %v735 = vsel %vm488, %v685, -inf
      %v736 = vrot.slane %v735, 4
      %v737 = vmax.f32 %v735, %v736
      %v738 = vrot.slane %v737, 2
      %v739 = vmax.f32 %v737, %v738
      %v740 = vrot.slane %v739, 1
      %v741 = vmax.f32 %v739, %v740
      %vm750 = vcmask 1041409
      %v751 = vsel %vm750, %v699, %v692
      %vm752 = vcmask 1042434
      %v753 = vsel %vm752, %v706, %v751
      %vm754 = vcmask 1043459
      %v755 = vsel %vm754, %v713, %v753
      %vm756 = vcmask 1044484
      %v757 = vsel %vm756, %v720, %v755
      %vm758 = vcmask 1045509
      %v759 = vsel %vm758, %v727, %v757
      %vm760 = vcmask 1046534
      %v761 = vsel %vm760, %v734, %v759
      %vm762 = vcmask 1047559
      %v763 = vsel %vm762, %v741, %v761
      %765 = vxpose.xlu0.b32.start [1/16] %v763, 128
      %766 = vxpose.xlu0.b32.cont [2/16] 0.0, 128
      %767 = vxpose.xlu0.b32.cont [3/16] 0.0, 128
      %768 = vxpose.xlu0.b32.cont [4/16] 0.0, 128
      %769 = vxpose.xlu0.b32.cont [5/16] 0.0, 128
      %770 = vxpose.xlu0.b32.cont [6/16] 0.0, 128
      %771 = vxpose.xlu0.b32.cont [7/16] 0.0, 128
      %772 = vxpose.xlu0.b32.cont [8/16] 0.0, 128
      %773 = vxpose.xlu0.b32.cont [9/16] 0.0, 128
      %774 = vxpose.xlu0.b32.cont [10/16] 0.0, 128
      %775 = vxpose.xlu0.b32.cont [11/16] 0.0, 128
      %776 = vxpose.xlu0.b32.cont [12/16] 0.0, 128
      %777 = vxpose.xlu0.b32.cont [13/16] 0.0, 128
      %778 = vxpose.xlu0.b32.cont [14/16] 0.0, 128
      %779 = vxpose.xlu0.b32.cont [15/16] 0.0, 128
      %780 = vxpose.xlu0.b32.end [16/16] 0.0, 128
      %v781 = vpop.trf.xlu0
      %v782 = vpop.trf.xlu0
      %v783 = vpop.trf.xlu0
      %v784 = vpop.trf.xlu0
      %v785 = vpop.trf.xlu0
      %v786 = vpop.trf.xlu0
      %v787 = vpop.trf.xlu0
      %v788 = vpop.trf.xlu0
      %v789 = vpop.trf.xlu0
      %v790 = vpop.trf.xlu0
      %v791 = vpop.trf.xlu0
      %v792 = vpop.trf.xlu0
      %v793 = vpop.trf.xlu0
      %v794 = vpop.trf.xlu0
      %v795 = vpop.trf.xlu0
      %v796 = vpop.trf.xlu0
      %vm797 = vcmask 64512
      %798 = vst.msk [vmem:[%s314] sm:$0xff] %vm797, %v781
      %799 = vst.msk [vmem:[%s314 + $0x8] sm:$0xff] %vm797, %v782
      %800 = vst.msk [vmem:[%s314 + $0x10] sm:$0xff] %vm797, %v783
      %801 = vst.msk [vmem:[%s314 + $0x18] sm:$0xff] %vm797, %v784
      %p802 = scmp.lt.s32.totalorder %s22, 1
      %s803 = scalar_select %p802, %s22, 1
      %p804 = scmp.lt.s32.totalorder %s23, 0
      %s805 = scalar_select %p804, %s23, 0
      %s806 = smul.addr %s803, 4
      %s807 = sadd.s32 %s805, %s806
      %s808 = smul.addr %s807, 8
      %s809 = scalar_lea.vmem %s7, %s808
      // Predicated region
      $region49: #{keypoint_encoder_forward.4} parent=47 // pred_check
        %p810 = pneg %p204
      $region50: #{keypoint_encoder_forward.4} parent=47 // pred_check_branch
        %812 = sbr.rel (%p810) target = $region52
      $region51: #{keypoint_encoder_forward.4} parent=47 // pred_region
        _
      $region52: #{keypoint_encoder_forward.4} parent=47 // pred_fallthru
        _
    $region48: #{keypoint_encoder_forward.4} parent=5 // pred_fallthru
      _
    %p813 = scmp.le.s32.totalorder 2, %s13
    // Predicated region
    $region53: #{keypoint_encoder_forward.4} parent=5 // pred_check
      %p814 = pneg %p813
    $region54: #{keypoint_encoder_forward.4} parent=5 // pred_check_branch
      %816 = sbr.rel (%p814) target = $region56
    $region55: #{keypoint_encoder_forward.4} parent=5 // pred_region
      %s817 = ssub.s32 %s13, 2
      // Predicated region
      $region57: #{keypoint_encoder_forward.4} parent=55 // pred_check
        %p818 = pneg %p210
      $region58: #{keypoint_encoder_forward.4} parent=55 // pred_check_branch
        %820 = sbr.rel (%p818) target = $region60
      $region59: #{keypoint_encoder_forward.4} parent=55 // pred_region
        %p821 = scmp.lt.s32.totalorder %s24, 1
        %s822 = scalar_select %p821, %s24, 1
        %p823 = scmp.lt.s32.totalorder %s25, 0
        %s824 = scalar_select %p823, %s25, 0
        %s825 = smul.addr %s822, 4
        %s826 = sadd.s32 %s824, %s825
        %s827 = smul.addr %s826, 8
        %s828 = scalar_lea.vmem %s7, %s827
      $region60: #{keypoint_encoder_forward.4} parent=55 // pred_fallthru
        _
    $region56: #{keypoint_encoder_forward.4} parent=5 // pred_fallthru
      _
  $region6: #{keypoint_encoder_forward.4} parent=0 // loop_footer
    %s17 = sadd.s32 1, %s13
  $region7: #{keypoint_encoder_forward.4} parent=0 // loop_footer_branch
    %12 = sbr.rel target = $region3
  $region8: #{keypoint_encoder_forward.4} parent=0 // loop_exit
    _

// kernel: keypoint_encoder_forward.5
$region0: #{keypoint_encoder_forward.5}
  #allocation0 [shape = 'u32[]', space=smem, size = 0x4, offset = 0x4, fixed_abs, tag = 'smem constant byte address 0x4 - core index']
  #allocation1 [shape = 'u32[144,128]{1,0:T(1,128)}', space=vmem, size = 0x12000, scoped, tag = 'internal scratch']
  %s0 = inlined_call_operand.vmem [shape: bf16[2,4,4,40], index: 0, kind: input, shape index: {}]
  %s1 = inlined_call_operand.vmem [shape: bf16[40,32], index: 1, kind: input, shape index: {}]
  %s2 = inlined_call_operand.vmem [shape: f32[1,32], index: 2, kind: input, shape index: {}]
  %s3 = inlined_call_operand.vmem [shape: bf16[32,32], index: 3, kind: input, shape index: {}]
  %s4 = inlined_call_operand.vmem [shape: f32[1,32], index: 4, kind: input, shape index: {}]
  %s5 = inlined_call_operand.vmem [shape: bf16[32,32], index: 5, kind: input, shape index: {}]
  %s6 = inlined_call_operand.vmem [shape: f32[1,32], index: 6, kind: input, shape index: {}]
  %s7 = inlined_call_operand.vmem [shape: f32[2,32,4], index: 7, kind: output, shape index: {}]
  %s8 = sld [smem:[#allocation0]]
  $region61: #{keypoint_encoder_forward.5} parent=0
    _
  %s10 = ssub.s32 1, %s8
  %s11 = scalar_select 0, %s10, %s8
  loop: start=0, step=1, limit=4
  $region2: #{keypoint_encoder_forward.5} parent=0 // loop_pre_header
    _
  $region3: #{keypoint_encoder_forward.5} parent=0 // loop_header
    %s13 = sphi 0, %s17
    %p14 = scmp.ge.s32.totalorder %s13, 4
    %s20 = sphi 0, %s32
    %s21 = sphi 0, %s28
    %s22 = sphi 0, %s20
    %s23 = sphi 0, %s21
    %s24 = sphi 0, %s22
    %s25 = sphi 0, %s23
    %s37 = sphi 0, %s39
    %s40 = sphi 0, %s37
    %s41 = sphi 0, %s40
    %s57 = sphi 0, %s41
    %s61 = sphi 0, %s61
    %s63 = sphi 0, %s61
    %s64 = sphi 0, %s63
    %s78 = sphi 0, %s64
    %s82 = sphi 0, %s82
    %s84 = sphi 0, %s82
    %s85 = sphi 0, %s84
    %s99 = sphi 0, %s85
    %s103 = sphi 0, %s103
    %s105 = sphi 0, %s103
    %s106 = sphi 0, %s105
    %s120 = sphi 0, %s106
    %s124 = sphi 0, %s124
    %s126 = sphi 0, %s124
    %s127 = sphi 0, %s126
    %s141 = sphi 0, %s127
    %s145 = sphi 0, %s145
    %s147 = sphi 0, %s145
    %s148 = sphi 0, %s147
    %s162 = sphi 0, %s148
    %s166 = sphi 0, %s166
    %s168 = sphi 0, %s166
    %s169 = sphi 0, %s168
    %s183 = sphi 0, %s169
    %s191 = sphi 0, %s193
    %s194 = sphi 0, %s191
    %s195 = sphi 0, %s194
    %s211 = sphi 0, %s195
  $region4: #{keypoint_encoder_forward.5} parent=0 // loop_header_branch
    %16 = sbr.rel (%p14) target = $region8
  $region5: #{keypoint_encoder_forward.5} parent=0 // loop_body
    %s18 = ssub.s32 %s13, 1
    %s19 = ssub.s32 %s13, 2
    %s26 = sadd.s32 1, %s21
    %p27 = scmp.ge.s32.totalorder %s26, 1
    %s28 = scalar_select %p27, 0, %s26
    %s29 = sadd.s32 1, %s20
    %s30 = scalar_select %p27, %s29, %s20
    %p31 = scmp.ge.s32.totalorder %s30, 2
    %s32 = scalar_select %p31, 0, %s30
    %s33 = ssub.s32 %s20, %s32
    %s34 = ssub.s32 %s21, %s28
    %s35 = sor.u32 %s33, %s34
    %p36 = scmp.eq.s32.totalorder %s35, 0
    %s38 = sadd.s32 %s37, 1
    %s39 = scalar_select %p36, %s37, %s38
    %p42 = pneg %p36
    %p43 = scmp.eq.s32.totalorder %s13, 1
    %p44 = por %p42, %p43
    %p45 = scmp.ne.s32.totalorder %s37, %s40
    %p46 = scmp.eq.s32.totalorder %s13, 0
    %p47 = por %p45, %p46
    %p48 = scmp.ne.s32.totalorder %s37, %s40
    %p49 = scmp.eq.s32.totalorder %s18, 1
    %p50 = por %p48, %p49
    %p51 = scmp.ne.s32.totalorder %s40, %s41
    %p52 = scmp.eq.s32.totalorder %s18, 0
    %p53 = por %p51, %p52
    %p54 = scmp.ne.s32.totalorder %s40, %s41
    %p55 = scmp.eq.s32.totalorder %s19, 1
    %p56 = por %p54, %p55
    %p58 = scmp.ne.s32.totalorder %s41, %s57
    %p59 = scmp.eq.s32.totalorder %s19, 0
    %p60 = por %p58, %p59
    %s62 = sadd.s32 %s61, 1
    %p65 = scmp.eq.s32.totalorder %s13, 1
    %p66 = scmp.ne.s32.totalorder %s61, %s63
    %p67 = scmp.eq.s32.totalorder %s13, 0
    %p68 = por %p66, %p67
    %p69 = scmp.ne.s32.totalorder %s61, %s63
    %p70 = scmp.eq.s32.totalorder %s18, 1
    %p71 = por %p69, %p70
    %p72 = scmp.ne.s32.totalorder %s63, %s64
    %p73 = scmp.eq.s32.totalorder %s18, 0
    %p74 = por %p72, %p73
    %p75 = scmp.ne.s32.totalorder %s63, %s64
    %p76 = scmp.eq.s32.totalorder %s19, 1
    %p77 = por %p75, %p76
    %p79 = scmp.ne.s32.totalorder %s64, %s78
    %p80 = scmp.eq.s32.totalorder %s19, 0
    %p81 = por %p79, %p80
    %s83 = sadd.s32 %s82, 1
    %p86 = scmp.eq.s32.totalorder %s13, 1
    %p87 = scmp.ne.s32.totalorder %s82, %s84
    %p88 = scmp.eq.s32.totalorder %s13, 0
    %p89 = por %p87, %p88
    %p90 = scmp.ne.s32.totalorder %s82, %s84
    %p91 = scmp.eq.s32.totalorder %s18, 1
    %p92 = por %p90, %p91
    %p93 = scmp.ne.s32.totalorder %s84, %s85
    %p94 = scmp.eq.s32.totalorder %s18, 0
    %p95 = por %p93, %p94
    %p96 = scmp.ne.s32.totalorder %s84, %s85
    %p97 = scmp.eq.s32.totalorder %s19, 1
    %p98 = por %p96, %p97
    %p100 = scmp.ne.s32.totalorder %s85, %s99
    %p101 = scmp.eq.s32.totalorder %s19, 0
    %p102 = por %p100, %p101
    %s104 = sadd.s32 %s103, 1
    %p107 = scmp.eq.s32.totalorder %s13, 1
    %p108 = scmp.ne.s32.totalorder %s103, %s105
    %p109 = scmp.eq.s32.totalorder %s13, 0
    %p110 = por %p108, %p109
    %p111 = scmp.ne.s32.totalorder %s103, %s105
    %p112 = scmp.eq.s32.totalorder %s18, 1
    %p113 = por %p111, %p112
    %p114 = scmp.ne.s32.totalorder %s105, %s106
    %p115 = scmp.eq.s32.totalorder %s18, 0
    %p116 = por %p114, %p115
    %p117 = scmp.ne.s32.totalorder %s105, %s106
    %p118 = scmp.eq.s32.totalorder %s19, 1
    %p119 = por %p117, %p118
    %p121 = scmp.ne.s32.totalorder %s106, %s120
    %p122 = scmp.eq.s32.totalorder %s19, 0
    %p123 = por %p121, %p122
    %s125 = sadd.s32 %s124, 1
    %p128 = scmp.eq.s32.totalorder %s13, 1
    %p129 = scmp.ne.s32.totalorder %s124, %s126
    %p130 = scmp.eq.s32.totalorder %s13, 0
    %p131 = por %p129, %p130
    %p132 = scmp.ne.s32.totalorder %s124, %s126
    %p133 = scmp.eq.s32.totalorder %s18, 1
    %p134 = por %p132, %p133
    %p135 = scmp.ne.s32.totalorder %s126, %s127
    %p136 = scmp.eq.s32.totalorder %s18, 0
    %p137 = por %p135, %p136
    %p138 = scmp.ne.s32.totalorder %s126, %s127
    %p139 = scmp.eq.s32.totalorder %s19, 1
    %p140 = por %p138, %p139
    %p142 = scmp.ne.s32.totalorder %s127, %s141
    %p143 = scmp.eq.s32.totalorder %s19, 0
    %p144 = por %p142, %p143
    %s146 = sadd.s32 %s145, 1
    %p149 = scmp.eq.s32.totalorder %s13, 1
    %p150 = scmp.ne.s32.totalorder %s145, %s147
    %p151 = scmp.eq.s32.totalorder %s13, 0
    %p152 = por %p150, %p151
    %p153 = scmp.ne.s32.totalorder %s145, %s147
    %p154 = scmp.eq.s32.totalorder %s18, 1
    %p155 = por %p153, %p154
    %p156 = scmp.ne.s32.totalorder %s147, %s148
    %p157 = scmp.eq.s32.totalorder %s18, 0
    %p158 = por %p156, %p157
    %p159 = scmp.ne.s32.totalorder %s147, %s148
    %p160 = scmp.eq.s32.totalorder %s19, 1
    %p161 = por %p159, %p160
    %p163 = scmp.ne.s32.totalorder %s148, %s162
    %p164 = scmp.eq.s32.totalorder %s19, 0
    %p165 = por %p163, %p164
    %s167 = sadd.s32 %s166, 1
    %p170 = scmp.eq.s32.totalorder %s13, 1
    %p171 = scmp.ne.s32.totalorder %s166, %s168
    %p172 = scmp.eq.s32.totalorder %s13, 0
    %p173 = por %p171, %p172
    %p174 = scmp.ne.s32.totalorder %s166, %s168
    %p175 = scmp.eq.s32.totalorder %s18, 1
    %p176 = por %p174, %p175
    %p177 = scmp.ne.s32.totalorder %s168, %s169
    %p178 = scmp.eq.s32.totalorder %s18, 0
    %p179 = por %p177, %p178
    %p180 = scmp.ne.s32.totalorder %s168, %s169
    %p181 = scmp.eq.s32.totalorder %s19, 1
    %p182 = por %p180, %p181
    %p184 = scmp.ne.s32.totalorder %s169, %s183
    %p185 = scmp.eq.s32.totalorder %s19, 0
    %p186 = por %p184, %p185
    %s187 = ssub.s32 %s20, %s32
    %s188 = ssub.s32 %s21, %s28
    %s189 = sor.u32 %s187, %s188
    %p190 = scmp.eq.s32.totalorder %s189, 0
    %s192 = sadd.s32 %s191, 1
    %s193 = scalar_select %p190, %s191, %s192
    %p196 = pneg %p190
    %p197 = scmp.eq.s32.totalorder %s13, 1
    %p198 = por %p196, %p197
    %p199 = scmp.ne.s32.totalorder %s191, %s194
    %p200 = scmp.eq.s32.totalorder %s13, 0
    %p201 = por %p199, %p200
    %p202 = scmp.ne.s32.totalorder %s191, %s194
    %p203 = scmp.eq.s32.totalorder %s18, 1
    %p204 = por %p202, %p203
    %p205 = scmp.ne.s32.totalorder %s194, %s195
    %p206 = scmp.eq.s32.totalorder %s18, 0
    %p207 = por %p205, %p206
    %p208 = scmp.ne.s32.totalorder %s194, %s195
    %p209 = scmp.eq.s32.totalorder %s19, 1
    %p210 = por %p208, %p209
    %p212 = scmp.ne.s32.totalorder %s195, %s211
    %p213 = scmp.eq.s32.totalorder %s19, 0
    %p214 = por %p212, %p213
    %p215 = scmp.le.s32.totalorder 1, %s13
    %p216 = scmp.lt.s32.totalorder %s13, 3
    %p217 = pnand %p215, %p216
    %p218 = pneg %p217
    // Predicated region
    $region9: #{keypoint_encoder_forward.5} parent=5 // pred_check
      _
    $region10: #{keypoint_encoder_forward.5} parent=5 // pred_check_branch
      %220 = sbr.rel (%p217) target = $region12
    $region11: #{keypoint_encoder_forward.5} parent=5 // pred_region
      %s221 = ssub.s32 %s13, 1
      // Predicated region
      $region13: #{keypoint_encoder_forward.5} parent=11 // pred_check
        %p222 = pneg %p74
      $region14: #{keypoint_encoder_forward.5} parent=11 // pred_check_branch
        %224 = sbr.rel (%p222) target = $region16
      $region15: #{keypoint_encoder_forward.5} parent=11 // pred_region
        _
      $region16: #{keypoint_encoder_forward.5} parent=11 // pred_fallthru
        _
      // Predicated region
      $region17: #{keypoint_encoder_forward.5} parent=11 // pred_check
        %p225 = pneg %p95
      $region18: #{keypoint_encoder_forward.5} parent=11 // pred_check_branch
        %227 = sbr.rel (%p225) target = $region20
      $region19: #{keypoint_encoder_forward.5} parent=11 // pred_region
        _
      $region20: #{keypoint_encoder_forward.5} parent=11 // pred_fallthru
        _
      // Predicated region
      $region21: #{keypoint_encoder_forward.5} parent=11 // pred_check
        %p228 = pneg %p116
      $region22: #{keypoint_encoder_forward.5} parent=11 // pred_check_branch
        %230 = sbr.rel (%p228) target = $region24
      $region23: #{keypoint_encoder_forward.5} parent=11 // pred_region
        _
      $region24: #{keypoint_encoder_forward.5} parent=11 // pred_fallthru
        _
      // Predicated region
      $region25: #{keypoint_encoder_forward.5} parent=11 // pred_check
        %p231 = pneg %p137
      $region26: #{keypoint_encoder_forward.5} parent=11 // pred_check_branch
        %233 = sbr.rel (%p231) target = $region28
      $region27: #{keypoint_encoder_forward.5} parent=11 // pred_region
        _
      $region28: #{keypoint_encoder_forward.5} parent=11 // pred_fallthru
        _
      // Predicated region
      $region29: #{keypoint_encoder_forward.5} parent=11 // pred_check
        %p234 = pneg %p158
      $region30: #{keypoint_encoder_forward.5} parent=11 // pred_check_branch
        %236 = sbr.rel (%p234) target = $region32
      $region31: #{keypoint_encoder_forward.5} parent=11 // pred_region
        _
      $region32: #{keypoint_encoder_forward.5} parent=11 // pred_fallthru
        _
      // Predicated region
      $region33: #{keypoint_encoder_forward.5} parent=11 // pred_check
        %p237 = pneg %p179
      $region34: #{keypoint_encoder_forward.5} parent=11 // pred_check_branch
        %239 = sbr.rel (%p237) target = $region36
      $region35: #{keypoint_encoder_forward.5} parent=11 // pred_region
        _
      $region36: #{keypoint_encoder_forward.5} parent=11 // pred_fallthru
        _
    $region12: #{keypoint_encoder_forward.5} parent=5 // pred_fallthru
      _
    %p240 = scmp.lt.s32.totalorder %s13, 2
    // Predicated region
    $region37: #{keypoint_encoder_forward.5} parent=5 // pred_check
      %p241 = pneg %p240
    $region38: #{keypoint_encoder_forward.5} parent=5 // pred_check_branch
      %243 = sbr.rel (%p241) target = $region40
    $region39: #{keypoint_encoder_forward.5} parent=5 // pred_region
      // Predicated region
      $region41: #{keypoint_encoder_forward.5} parent=39 // pred_check
        %p244 = pneg %p47
      $region42: #{keypoint_encoder_forward.5} parent=39 // pred_check_branch
        %246 = sbr.rel (%p244) target = $region44
      $region43: #{keypoint_encoder_forward.5} parent=39 // pred_region
        %s247 = smul.u32 4, %s21
        %p248 = scmp.lt.s32.totalorder %s20, 1
        %s249 = scalar_select %p248, %s20, 1
        %p250 = scmp.lt.s32.totalorder %s247, 3
        %s251 = scalar_select %p250, %s247, 3
        %s252 = smul.addr %s249, 4
        %s253 = sadd.s32 %s251, %s252
        %s254 = smul.addr %s253, 2
        %s255 = scalar_lea.vmem %s0, %s254
        %s256 = smul.u32 4, %s21
      $region44: #{keypoint_encoder_forward.5} parent=39 // pred_fallthru
        _
    $region40: #{keypoint_encoder_forward.5} parent=5 // pred_fallthru
      _
    %p257 = scmp.le.s32.totalorder 1, %s13
    %p258 = scmp.lt.s32.totalorder %s13, 3
    %p259 = pnand %p257, %p258
    %p260 = pneg %p259
    // Predicated region
    $region45: #{keypoint_encoder_forward.5} parent=5 // pred_check
      _
    $region46: #{keypoint_encoder_forward.5} parent=5 // pred_check_branch
      %262 = sbr.rel (%p259) target = $region48
    $region47: #{keypoint_encoder_forward.5} parent=5 // pred_region
      %s263 = ssub.s32 %s13, 1
      %s264 = smul.u32 4, %s23
      %p265 = scmp.lt.s32.totalorder %s22, 1
      %s266 = scalar_select %p265, %s22, 1
      %p267 = scmp.lt.s32.totalorder %s264, 3
      %s268 = scalar_select %p267, %s264, 3
      %s269 = smul.addr %s266, 4
      %s270 = sadd.s32 %s268, %s269
      %s271 = smul.addr %s270, 2
      %s272 = scalar_lea.vmem %s0, %s271
      %p273 = pneg %p53
      %p274 = pneg %p50
      %p275 = pneg %p74
      %p276 = pneg %p71
      %p277 = pneg %p95
      %p278 = pneg %p92
      %p279 = pneg %p116
      %p280 = pneg %p113
      %p281 = pneg %p137
      %p282 = pneg %p134
      %p283 = pneg %p158
      %p284 = pneg %p155
      %p285 = pneg %p179
      %p286 = pneg %p176
      %p287 = pneg %p207
      %p288 = pneg %p204
      %p289 = scmp.lt.s32.totalorder %s22, 1
      %s290 = scalar_select %p289, %s22, 1
      %p291 = scmp.lt.s32.totalorder %s23, 0
      %s292 = scalar_select %p291, %s23, 0
      %s293 = smul.addr %s290, 4
      %s294 = sadd.s32 %s292, %s293
      %s295 = smul.addr %s294, 8
      %s296 = scalar_lea.vmem %s7, %s295
      %s297 = smul.u32 4, %s23
      %p298 = scmp.lt.s32.totalorder %s22, 1
      %s299 = scalar_select %p298, %s22, 1
      %p300 = scmp.lt.s32.totalorder %s297, 3
      %s301 = scalar_select %p300, %s297, 3
      %s302 = smul.addr %s299, 4
      %s303 = sadd.s32 %s301, %s302
      %s304 = smul.addr %s303, 2
      %s305 = scalar_lea.vmem %s0, %s304
      %s306 = smul.u32 4, %s23
      %p307 = scmp.lt.s32.totalorder %s22, 1
      %s308 = scalar_select %p307, %s22, 1
      %p309 = scmp.lt.s32.totalorder %s23, 0
      %s310 = scalar_select %p309, %s23, 0
      %s311 = smul.addr %s308, 4
      %s312 = sadd.s32 %s310, %s311
      %s313 = smul.addr %s312, 8
      %s314 = scalar_lea.vmem %s7, %s313
      %v316 = vld [vmem:[%s305] sm:$0x3]
      %v317 = vld [vmem:[%s305 + $0x2] sm:$0x3]
      %v318 = vld [vmem:[%s305 + $0x4] sm:$0x3]
      %v319 = vld [vmem:[%s305 + $0x6] sm:$0x3]
      %v320 = vld [vmem:[%s1] sm:$0xf]
      %v321 = vld [vmem:[%s1 + $0x4] sm:$0xf]
      %v322 = vld [vmem:[%s1 + $0x8] sm:$0xf]
      %v323 = vld [vmem:[%s1 + $0xc] sm:$0xf]
      %v324 = vld [vmem:[%s1 + $0x10] sm:$0xf]
      %v325 = vld [vmem:[%s2] sm:$0x1]
      %v327 = vlaneseq
      %v328 = vshrl.u32 %v327, 7
      %v329 = vsub.s32 0, %v328
      %v330 = vrot.slane %v325, %v329
      %v336 = vcombine.low %v316, %v317
      %v337 = vcombine.low %v318, %v319
      %v339 = vunpack.c.l.s4 1983009808
      %v340 = vunpack.c.0.s8 %v339
      %v341 = vlaneseq
      %v342 = vshrl.u32 %v341, 7
      %v343 = vsub.s32 %v340, %v342
      %v344 = vrot.slane %v336, %v343
      %v346 = vunpack.c.l.s4 1983009808
      %v347 = vunpack.c.0.s8 %v346
      %v348 = vlaneseq
      %v349 = vshrl.u32 %v348, 7
      %v350 = vsub.s32 %v347, %v349
      %v351 = vrot.slane %v337, %v350
      %v352 = vcombine.low %v344, %v351
      %v358 = vunpack.c.l.b16 %v320
      %v359 = vunpack.c.l.b16 %v321
      %v360 = vunpack.c.l.b16 %v322
      %v361 = vunpack.c.l.b16 %v323
      %v362 = vunpack.c.l.b16 %v324
      %v363 = vpack.c.b16 %v359, %v358
      %v364 = vpack.c.b16 %v361, %v360
      %v365 = vpack.c.b16 %v362, %v362
      %vm368 = vcmask 326656
      %v370 = vsel %vm368, %v352, 0
      %vm372 = vcmask 1043456
      %v374 = vsel %vm372, %v365, 0
      %376 = vmatprep.subr.bf16.mxu0 0
      %377 = vmatpush1.bf16.msra.mxu0 %v363
      %378 = vmatprep.subr.bf16.mxu0 0
      %379 = vmatpush1.bf16.msra.mxu0 %v364
      %380 = vmatprep.subr.bf16.mxu0 0
      %381 = vmatpush1.bf16.msra.mxu0 %v374
      %382 = vmatprep.subr.bf16.mxu0 0
      %383 = vmatpush1.bf16.msra.mxu0 0
      %384 = vmatprep.subr.bf16.mxu0 0
      %385 = vmatpush1.bf16.msra.mxu0 0
      %386 = vmatprep.subr.bf16.mxu0 0
      %387 = vmatpush1.bf16.msra.mxu0 0
      %388 = vmatprep.subr.bf16.mxu0 0
      %389 = vmatpush1.bf16.msra.mxu0 0
      %390 = vmatprep.subr.bf16.mxu0 0
      %391 = vmatpush1.bf16.msra.mxu0 0
      %392 = vmatprep.subr.bf16.mxu0 0
      %393 = vmatpush1.bf16.msra.mxu0 0
      %394 = vmatprep.subr.bf16.mxu0 0
      %395 = vmatpush1.bf16.msra.mxu0 0
      %396 = vmatprep.subr.bf16.mxu0 0
      %397 = vmatpush1.bf16.msra.mxu0 0
      %398 = vmatprep.subr.bf16.mxu0 0
      %399 = vmatpush1.bf16.msra.mxu0 0
      %400 = vmatprep.subr.bf16.mxu0 0
      %401 = vmatpush1.bf16.msra.mxu0 0
      %402 = vmatprep.subr.bf16.mxu0 0
      %403 = vmatpush1.bf16.msra.mxu0 0
      %404 = vmatprep.subr.bf16.mxu0 0
      %405 = vmatpush1.bf16.msra.mxu0 0
      %406 = vmatprep.subr.bf16.mxu0 0
      %407 = vmatpush1.bf16.msra.mxu0 0
      %408 = vmatprep.mubr.bf16.mxu0 0
      %409 = vmatmul.mubr.bf16.gmra.mrb[0].mxu0 %v370
      %v410 = vpop.f32.mrb[0].mxu0
      %v411 = vadd.f32 %v330, %v410
      %v412 = vpop.f32.mrb[0].mxu0
      %v413 = vpop.f32.mrb[0].mxu0
      %v414 = vadd.f32 %v330, %v413
      %v415 = vpop.f32.mrb[0].mxu0
      %416 = vdwg.mxu0
      %v417 = vmax.f32 %v411, 0.0
      %v418 = vmax.f32 %v414, 0.0
      %v419 = vld [vmem:[%s3] sm:$0xf]
      %v420 = vld [vmem:[%s3 + $0x4] sm:$0xf]
      %v421 = vld [vmem:[%s3 + $0x8] sm:$0xf]
      %v422 = vld [vmem:[%s3 + $0xc] sm:$0xf]
      %v423 = vld [vmem:[%s4] sm:$0x1]
      %v424 = vpack.c.bf16 %v418, %v417
      %v426 = vlaneseq
      %v427 = vshrl.u32 %v426, 7
      %v428 = vsub.s32 0, %v427
      %v429 = vrot.slane %v423, %v428
      %v435 = vunpack.c.l.b16 %v419
      %v436 = vunpack.c.l.b16 %v420
      %v437 = vunpack.c.l.b16 %v421
      %v438 = vunpack.c.l.b16 %v422
      %v439 = vpack.c.b16 %v436, %v435
      %v440 = vpack.c.b16 %v438, %v437
      %vm443 = vcmask 261120
      %v445 = vsel %vm443, %v424, 0
      %447 = vmatprep.subr.bf16.mxu0 0
      %448 = vmatpush1.bf16.msra.mxu0 %v439
      %449 = vmatprep.subr.bf16.mxu0 0
      %450 = vmatpush1.bf16.msra.mxu0 %v440
      %451 = vmatprep.subr.bf16.mxu0 0
      %452 = vmatpush1.bf16.msra.mxu0 0
      %453 = vmatprep.subr.bf16.mxu0 0
      %454 = vmatpush1.bf16.msra.mxu0 0
      %455 = vmatprep.subr.bf16.mxu0 0
      %456 = vmatpush1.bf16.msra.mxu0 0
      %457 = vmatprep.subr.bf16.mxu0 0
      %458 = vmatpush1.bf16.msra.mxu0 0
      %459 = vmatprep.subr.bf16.mxu0 0
      %460 = vmatpush1.bf16.msra.mxu0 0
      %461 = vmatprep.subr.bf16.mxu0 0
      %462 = vmatpush1.bf16.msra.mxu0 0
      %463 = vmatprep.subr.bf16.mxu0 0
      %464 = vmatpush1.bf16.msra.mxu0 0
      %465 = vmatprep.subr.bf16.mxu0 0
      %466 = vmatpush1.bf16.msra.mxu0 0
      %467 = vmatprep.subr.bf16.mxu0 0
      %468 = vmatpush1.bf16.msra.mxu0 0
      %469 = vmatprep.subr.bf16.mxu0 0
      %470 = vmatpush1.bf16.msra.mxu0 0
      %471 = vmatprep.subr.bf16.mxu0 0
      %472 = vmatpush1.bf16.msra.mxu0 0
      %473 = vmatprep.subr.bf16.mxu0 0
      %474 = vmatpush1.bf16.msra.mxu0 0
      %475 = vmatprep.subr.bf16.mxu0 0
      %476 = vmatpush1.bf16.msra.mxu0 0
      %477 = vmatprep.subr.bf16.mxu0 0
      %478 = vmatpush1.bf16.msra.mxu0 0
      %479 = vmatprep.mubr.bf16.mxu0 0
      %480 = vmatmul.mubr.bf16.gmra.mrb[0].mxu0 %v445
      %v481 = vpop.f32.mrb[0].mxu0
      %v482 = vadd.f32 %v429, %v481
      %v483 = vpop.f32.mrb[0].mxu0
      %v484 = vpop.f32.mrb[0].mxu0
      %v485 = vadd.f32 %v429, %v484
      %v486 = vpop.f32.mrb[0].mxu0
      %487 = vdwg.mxu0
      %v488 = vmax.f32 %v482, 0.0
      %v489 = vmax.f32 %v485, 0.0
      %v490 = vld [vmem:[%s5] sm:$0xf]
      %v491 = vld [vmem:[%s5 + $0x4] sm:$0xf]
      %v492 = vld [vmem:[%s5 + $0x8] sm:$0xf]
      %v493 = vld [vmem:[%s5 + $0xc] sm:$0xf]
      %v494 = vld [vmem:[%s6] sm:$0x1]
      %v495 = vpack.c.bf16 %v489, %v488
      %v497 = vlaneseq
      %v498 = vshrl.u32 %v497, 7
      %v499 = vsub.s32 0, %v498
      %v500 = vrot.slane %v494, %v499
      %v506 = vunpack.c.l.b16 %v490
      %v507 = vunpack.c.l.b16 %v491
      %v508 = vunpack.c.l.b16 %v492
      %v509 = vunpack.c.l.b16 %v493
      %v510 = vpack.c.b16 %v507, %v506
      %v511 = vpack.c.b16 %v509, %v508
      %v515 = vsel %vm443, %v495, 0
      %517 = vmatprep.subr.bf16.mxu0 0
      %518 = vmatpush1.bf16.msra.mxu0 %v510
      %519 = vmatprep.subr.bf16.mxu0 0
      %520 = vmatpush1.bf16.msra.mxu0 %v511
      %521 = vmatprep.subr.bf16.mxu0 0
      %522 = vmatpush1.bf16.msra.mxu0 0
      %523 = vmatprep.subr.bf16.mxu0 0
      %524 = vmatpush1.bf16.msra.mxu0 0
      %525 = vmatprep.subr.bf16.mxu0 0
      %526 = vmatpush1.bf16.msra.mxu0 0
      %527 = vmatprep.subr.bf16.mxu0 0
      %528 = vmatpush1.bf16.msra.mxu0 0
      %529 = vmatprep.subr.bf16.mxu0 0
      %530 = vmatpush1.bf16.msra.mxu0 0
      %531 = vmatprep.subr.bf16.mxu0 0
      %532 = vmatpush1.bf16.msra.mxu0 0
      %533 = vmatprep.subr.bf16.mxu0 0
      %534 = vmatpush1.bf16.msra.mxu0 0
      %535 = vmatprep.subr.bf16.mxu0 0
      %536 = vmatpush1.bf16.msra.mxu0 0
      %537 = vmatprep.subr.bf16.mxu0 0
      %538 = vmatpush1.bf16.msra.mxu0 0
      %539 = vmatprep.subr.bf16.mxu0 0
      %540 = vmatpush1.bf16.msra.mxu0 0
      %541 = vmatprep.subr.bf16.mxu0 0
      %542 = vmatpush1.bf16.msra.mxu0 0
      %543 = vmatprep.subr.bf16.mxu0 0
      %544 = vmatpush1.bf16.msra.mxu0 0
      %545 = vmatprep.subr.bf16.mxu0 0
      %546 = vmatpush1.bf16.msra.mxu0 0
      %547 = vmatprep.subr.bf16.mxu0 0
      %548 = vmatpush1.bf16.msra.mxu0 0
      %549 = vmatprep.mubr.bf16.mxu0 0
      %550 = vmatmul.mubr.bf16.gmra.mrb[0].mxu0 %v515
      %v551 = vpop.f32.mrb[0].mxu0
      %v552 = vadd.f32 %v500, %v551
      %v553 = vpop.f32.mrb[0].mxu0
      %v554 = vpop.f32.mrb[0].mxu0
      %v555 = vadd.f32 %v500, %v554
      %v556 = vpop.f32.mrb[0].mxu0
      %557 = vdwg.mxu0
      %v558 = vmax.f32 %v552, 0.0
      %v559 = vmax.f32 %v555, 0.0
      %v562 = vcombine.high %v558, %v558
      %v563 = vcombine.high %v559, %v559
      %vm566 = vcmask 257024
      %v567 = vsel %vm566, %v558, -inf
      %v568 = vrot.slane %v567, 4
      %v569 = vmax.f32 %v567, %v568
      %v570 = vrot.slane %v569, 2
      %v571 = vmax.f32 %v569, %v570
      %v572 = vrot.slane %v571, 1
      %v573 = vmax.f32 %v571, %v572
      %v574 = vsel %vm566, %v562, -inf
      %v575 = vrot.slane %v574, 4
      %v576 = vmax.f32 %v574, %v575
      %v577 = vrot.slane %v576, 2
      %v578 = vmax.f32 %v576, %v577
      %v579 = vrot.slane %v578, 1
      %v580 = vmax.f32 %v578, %v579
      %v581 = vsel %vm566, %v559, -inf
      %v582 = vrot.slane %v581, 4
      %v583 = vmax.f32 %v581, %v582
      %v584 = vrot.slane %v583, 2
      %v585 = vmax.f32 %v583, %v584
      %v586 = vrot.slane %v585, 1
      %v587 = vmax.f32 %v585, %v586
      %v588 = vsel %vm566, %v563, -inf
      %v589 = vrot.slane %v588, 4
      %v590 = vmax.f32 %v588, %v589
      %v591 = vrot.slane %v590, 2
      %v592 = vmax.f32 %v590, %v591
      %v593 = vrot.slane %v592, 1
      %v594 = vmax.f32 %v592, %v593
      %vm599 = vcmask 1041409
      %v600 = vsel %vm599, %v580, %v573
      %vm601 = vcmask 1042434
      %v602 = vsel %vm601, %v587, %v600
      %vm603 = vcmask 1043459
      %v604 = vsel %vm603, %v594, %v602
      %606 = vxpose.xlu0.b32.start [1/16] %v604, 128
      %607 = vxpose.xlu0.b32.cont [2/16] 0.0, 128
      %608 = vxpose.xlu0.b32.cont [3/16] 0.0, 128
      %609 = vxpose.xlu0.b32.cont [4/16] 0.0, 128
      %610 = vxpose.xlu0.b32.cont [5/16] 0.0, 128
      %611 = vxpose.xlu0.b32.cont [6/16] 0.0, 128
      %612 = vxpose.xlu0.b32.cont [7/16] 0.0, 128
      %613 = vxpose.xlu0.b32.cont [8/16] 0.0, 128
      %614 = vxpose.xlu0.b32.cont [9/16] 0.0, 128
      %615 = vxpose.xlu0.b32.cont [10/16] 0.0, 128
      %616 = vxpose.xlu0.b32.cont [11/16] 0.0, 128
      %617 = vxpose.xlu0.b32.cont [12/16] 0.0, 128
      %618 = vxpose.xlu0.b32.cont [13/16] 0.0, 128
      %619 = vxpose.xlu0.b32.cont [14/16] 0.0, 128
      %620 = vxpose.xlu0.b32.cont [15/16] 0.0, 128
      %621 = vxpose.xlu0.b32.end [16/16] 0.0, 128
      %v622 = vpop.trf.xlu0
      %v623 = vpop.trf.xlu0
      %v624 = vpop.trf.xlu0
      %v625 = vpop.trf.xlu0
      %v626 = vpop.trf.xlu0
      %v627 = vpop.trf.xlu0
      %v628 = vpop.trf.xlu0
      %v629 = vpop.trf.xlu0
      %v630 = vpop.trf.xlu0
      %v631 = vpop.trf.xlu0
      %v632 = vpop.trf.xlu0
      %v633 = vpop.trf.xlu0
      %v634 = vpop.trf.xlu0
      %v635 = vpop.trf.xlu0
      %v636 = vpop.trf.xlu0
      %v637 = vpop.trf.xlu0
      %vm638 = vcmask 31744
      %639 = vst.msk [vmem:[%s314] sm:$0xff] %vm638, %v622
      %640 = vst.msk [vmem:[%s314 + $0x8] sm:$0xff] %vm638, %v623
      %641 = vst.msk [vmem:[%s314 + $0x10] sm:$0xff] %vm638, %v624
      %642 = vst.msk [vmem:[%s314 + $0x18] sm:$0xff] %vm638, %v625
      %p643 = scmp.lt.s32.totalorder %s22, 1
      %s644 = scalar_select %p643, %s22, 1
      %p645 = scmp.lt.s32.totalorder %s23, 0
      %s646 = scalar_select %p645, %s23, 0
      %s647 = smul.addr %s644, 4
      %s648 = sadd.s32 %s646, %s647
      %s649 = smul.addr %s648, 8
      %s650 = scalar_lea.vmem %s7, %s649
      // Predicated region
      $region49: #{keypoint_encoder_forward.5} parent=47 // pred_check
        %p651 = pneg %p204
      $region50: #{keypoint_encoder_forward.5} parent=47 // pred_check_branch
        %653 = sbr.rel (%p651) target = $region52
      $region51: #{keypoint_encoder_forward.5} parent=47 // pred_region
        _
      $region52: #{keypoint_encoder_forward.5} parent=47 // pred_fallthru
        _
    $region48: #{keypoint_encoder_forward.5} parent=5 // pred_fallthru
      _
    %p654 = scmp.le.s32.totalorder 2, %s13
    // Predicated region
    $region53: #{keypoint_encoder_forward.5} parent=5 // pred_check
      %p655 = pneg %p654
    $region54: #{keypoint_encoder_forward.5} parent=5 // pred_check_branch
      %657 = sbr.rel (%p655) target = $region56
    $region55: #{keypoint_encoder_forward.5} parent=5 // pred_region
      %s658 = ssub.s32 %s13, 2
      // Predicated region
      $region57: #{keypoint_encoder_forward.5} parent=55 // pred_check
        %p659 = pneg %p210
      $region58: #{keypoint_encoder_forward.5} parent=55 // pred_check_branch
        %661 = sbr.rel (%p659) target = $region60
      $region59: #{keypoint_encoder_forward.5} parent=55 // pred_region
        %p662 = scmp.lt.s32.totalorder %s24, 1
        %s663 = scalar_select %p662, %s24, 1
        %p664 = scmp.lt.s32.totalorder %s25, 0
        %s665 = scalar_select %p664, %s25, 0
        %s666 = smul.addr %s663, 4
        %s667 = sadd.s32 %s665, %s666
        %s668 = smul.addr %s667, 8
        %s669 = scalar_lea.vmem %s7, %s668
      $region60: #{keypoint_encoder_forward.5} parent=55 // pred_fallthru
        _
    $region56: #{keypoint_encoder_forward.5} parent=5 // pred_fallthru
      _
  $region6: #{keypoint_encoder_forward.5} parent=0 // loop_footer
    %s17 = sadd.s32 1, %s13
  $region7: #{keypoint_encoder_forward.5} parent=0 // loop_footer_branch
    %12 = sbr.rel target = $region3
  $region8: #{keypoint_encoder_forward.5} parent=0 // loop_exit
    _

</llo_original>
